<compile_context>
chip_gen: v7x
topology: tpu7x:2x2x1
jax: 0.10.0
libtpu: 0.0.40
codegen_flags: <defaults>
</compile_context>

<pallas_src>
import functools

import jax
import jax.numpy as jnp
from jax.experimental import pallas as pl
from jax.experimental.pallas import tpu as pltpu


def _round_up(x, m):
    return ((x + m - 1) // m) * m


# ---------------------------------------------------------------------------
# Kernels
# ---------------------------------------------------------------------------
def _clip_mlp_kernel_fused(x_ref, w1_ref, b1_ref, w2_ref, b2_ref, o_ref):
    """Whole-I step: one (tm, H) row tile, full intermediate dim.

    grid = (Mp // tm,).  No accumulator scratch, no init/finalize `pl.when`;
    W1/W2 are streamed exactly once per row tile.
    """
    h = jnp.dot(x_ref[...], w1_ref[...], preferred_element_type=jnp.float32)
    h = h + b1_ref[...].astype(jnp.float32)
    h = h * jax.nn.sigmoid(1.702 * h)            # quick_gelu (CLIP hidden_act)
    # NOTE: with bf16 weights h is downcast for the MXU (f32 accumulation kept);
    # tolerance for this path is validated in the test below.
    y = jnp.dot(h.astype(w2_ref.dtype), w2_ref[...],
                preferred_element_type=jnp.float32)
    o_ref[...] = (y + b2_ref[...].astype(jnp.float32)).astype(o_ref.dtype)


def _clip_mlp_kernel_chunked(x_ref, w1_ref, b1_ref, w2_ref, b2_ref, o_ref,
                             acc_ref):
    """Intermediate-chunked step.  grid = (Mp // tm, Ip // ti).

    x_ref : (tm, H)   input row tile (resident across the chunk axis)
    w1_ref: (H, ti)   fc1 weight column chunk
    b1_ref: (1, ti)   fc1 bias chunk
    w2_ref: (ti, H)   fc2 weight row chunk
    b2_ref: (1, H)    fc2 bias (added once, in the finalize step)
    o_ref : (tm, H)   output row tile (written once, on the last chunk)
    acc_ref: (tm, H)  f32 accumulator scratch
    """
    c = pl.program_id(1)

    @pl.when(c == 0)
    def _init():
        acc_ref[...] = jnp.zeros_like(acc_ref)

    h = jnp.dot(x_ref[...], w1_ref[...], preferred_element_type=jnp.float32)
    h = h + b1_ref[...].astype(jnp.float32)
    h = h * jax.nn.sigmoid(1.702 * h)
    acc_ref[...] += jnp.dot(h.astype(w2_ref.dtype), w2_ref[...],
                            preferred_element_type=jnp.float32)

    @pl.when(c == pl.num_programs(1) - 1)
    def _finalize():
        o_ref[...] = (acc_ref[...] + b2_ref[...].astype(jnp.float32)
                      ).astype(o_ref.dtype)


# ---------------------------------------------------------------------------
# Wrapper
# ---------------------------------------------------------------------------
@functools.partial(
    jax.jit, static_argnames=("tm", "ti", "compute_dtype", "vmem_budget"))
def clip_mlp(hidden_states, w1, b1, w2, b2, *, tm=None, ti=None,
             compute_dtype=None, vmem_budget=40 << 20):
    """Fused CLIPMLP: quick_gelu(x @ W1 + b1) @ W2 + b2.

    hidden_states: [B, S, H]; w1: [H, I]; b1: [I]; w2: [I, H]; b2: [H].
    `compute_dtype=jnp.bfloat16` casts x/W1/W2 at the boundary (f32 accum kept).
    """
    if compute_dtype is not None:
        hidden_states = hidden_states.astype(compute_dtype)
        w1 = w1.astype(compute_dtype)
        w2 = w2.astype(compute_dtype)

    B, S, H = hidden_states.shape
    assert w1.shape[0] == H and w2.shape[1] == H
    I = w1.shape[1]
    M = B * S

    x_item = jnp.dtype(hidden_states.dtype).itemsize
    w_item = jnp.dtype(w1.dtype).itemsize

    # ---- tile selection ------------------------------------------------------
    Mp8 = _round_up(M, 8)
    Ip_full = _round_up(I, 128)

    if tm is None:
        # Small M (CLIP text) => single row tile: never re-stream W1/W2 across
        # row tiles (that doubles the dominant HBM traffic).  Large M (vision /
        # big batch) => MXU-sized row tiles.
        tm = Mp8 if Mp8 <= 512 else 256
    tm = _round_up(max(8, min(tm, Mp8)), 8)

    def _footprint(ti_, chunked):
        b = (4 * tm * H * x_item          # x + out tiles, double buffered
             + 4 * H * ti_ * w_item       # w1 + w2 chunks, double buffered
             + 16 * ti_ * w_item          # fc1 bias chunk (sublane padded)
             + 16 * H * w_item            # fc2 bias
             + 3 * tm * ti_ * 4)          # live f32 temps (h / sigmoid / prod)
        if chunked:
            b += tm * H * 4               # f32 accumulator scratch
        return b

    if ti is None:
        if _footprint(Ip_full, chunked=False) <= vmem_budget:
            ti = Ip_full                  # collapse the reduction axis entirely
        else:
            ti = 2048
            while ti > 128 and _footprint(ti, chunked=True) > vmem_budget:
                ti //= 2
    ti = _round_up(max(128, min(ti, Ip_full)), 128)

    Mp = _round_up(M, tm)
    Ip = _round_up(I, ti)
    single_chunk = (Ip // ti) == 1
    grid0 = Mp // tm

    # ---- pad to tile multiples (exact: quick_gelu(0) == 0 and padded fc2 rows
    # are zero, so padded I chunks contribute nothing; padded rows are sliced
    # off at the end). ---------------------------------------------------------
    # TODO(synk): for large-M vision calls, handle the ragged last row tile
    # in-kernel (masked store) instead of jnp.pad + slice to save 2*M*H bytes.
    x2d = hidden_states.reshape(M, H)
    if Mp != M:
        x2d = jnp.pad(x2d, ((0, Mp - M), (0, 0)))
    w1p, b1p, w2p = w1, b1, w2
    if Ip != I:
        w1p = jnp.pad(w1, ((0, 0), (0, Ip - I)))
        b1p = jnp.pad(b1, ((0, Ip - I),))
        w2p = jnp.pad(w2, ((0, Ip - I), (0, 0)))
    b1_2d = b1p.reshape(1, Ip)
    b2_2d = b2.reshape(1, H)

    # ---- explicit VMEM budget and cost hints ---------------------------------
    fp = _footprint(ti, chunked=not single_chunk)
    vmem_limit = max(min(int(fp * 1.4) + (2 << 20), 96 << 20), 4 << 20)

    cost = pl.CostEstimate(
        flops=4 * Mp * H * Ip,                       # two matmuls (padded work)
        transcendentals=Mp * Ip,                     # sigmoid in quick_gelu
        bytes_accessed=(2 * Mp * H * x_item          # read x, write out
                        + grid0 * 2 * H * Ip * w_item    # weights per row tile
                        + grid0 * (Ip + H) * w_item),    # biases per row tile
    )

    if single_chunk:
        out = pl.pallas_call(
            _clip_mlp_kernel_fused,
            out_shape=jax.ShapeDtypeStruct((Mp, H), hidden_states.dtype),
            grid_spec=pltpu.PrefetchScalarGridSpec(
                num_scalar_prefetch=0,
                grid=(grid0,),
                in_specs=[
                    pl.BlockSpec((tm, H), lambda i: (i, 0)),   # x row tile
                    pl.BlockSpec((H, Ip), lambda i: (0, 0)),   # fc1 weight
                    pl.BlockSpec((1, Ip), lambda i: (0, 0)),   # fc1 bias
                    pl.BlockSpec((Ip, H), lambda i: (0, 0)),   # fc2 weight
                    pl.BlockSpec((1, H), lambda i: (0, 0)),    # fc2 bias
                ],
                out_specs=pl.BlockSpec((tm, H), lambda i: (i, 0)),
            ),
            compiler_params=pltpu.CompilerParams(
                dimension_semantics=("parallel",),
                vmem_limit_bytes=vmem_limit,
            ),
            cost_estimate=cost,
        )(x2d, w1p, b1_2d, w2p, b2_2d)
    else:
        out = pl.pallas_call(
            _clip_mlp_kernel_chunked,
            out_shape=jax.ShapeDtypeStruct((Mp, H), hidden_states.dtype),
            grid_spec=pltpu.PrefetchScalarGridSpec(
                num_scalar_prefetch=0,
                grid=(grid0, Ip // ti),
                in_specs=[
                    pl.BlockSpec((tm, H), lambda i, c: (i, 0)),  # x row tile
                    pl.BlockSpec((H, ti), lambda i, c: (0, c)),  # fc1 w chunk
                    pl.BlockSpec((1, ti), lambda i, c: (0, c)),  # fc1 b chunk
                    pl.BlockSpec((ti, H), lambda i, c: (c, 0)),  # fc2 w chunk
                    pl.BlockSpec((1, H), lambda i, c: (0, 0)),   # fc2 bias
                ],
                out_specs=pl.BlockSpec((tm, H), lambda i, c: (i, 0)),
                scratch_shapes=[pltpu.VMEM((tm, H), jnp.float32)],
            ),
            compiler_params=pltpu.CompilerParams(
                dimension_semantics=("parallel", "arbitrary"),
                vmem_limit_bytes=vmem_limit,
            ),
            cost_estimate=cost,
        )(x2d, w1p, b1_2d, w2p, b2_2d)

    return out[:M].reshape(B, S, H)


def _reference(hidden_states, w1, b1, w2, b2):
    x = hidden_states.astype(jnp.float32)
    h = x @ w1.astype(jnp.float32) + b1.astype(jnp.float32)
    h = h * jax.nn.sigmoid(1.702 * h)
    return h @ w2.astype(jnp.float32) + b2.astype(jnp.float32)


if __name__ == "__main__":
    # CLIP-text-like small shapes: seq_len = 77 (exercises row padding),
    # hidden = 128 (lane dense), intermediate = 4 * hidden.
    B, S, H = 2, 77, 128
    I = 4 * H  # 512

    key = jax.random.PRNGKey(0)
    k_x, k_w1, k_b1, k_w2, k_b2 = jax.random.split(key, 5)

    x = jax.random.normal(k_x, (B, S, H), dtype=jnp.float32)
    w1 = jax.random.normal(k_w1, (H, I), dtype=jnp.float32) * 0.05
    b1 = jax.random.normal(k_b1, (I,), dtype=jnp.float32) * 0.01
    w2 = jax.random.normal(k_w2, (I, H), dtype=jnp.float32) * 0.05
    b2 = jax.random.normal(k_b2, (H,), dtype=jnp.float32) * 0.01

    y_ref = _reference(x, w1, b1, w2, b2)

    # 1) Default path: single row tile (M=154 -> tm=160), full-I fused kernel
    #    (no accumulator, weights streamed exactly once). f32 => tight check.
    y = clip_mlp(x, w1, b1, w2, b2)
    jax.block_until_ready(y)
    assert y.shape == (B, S, H)
    err = float(jnp.max(jnp.abs(y - y_ref)))
    assert jnp.allclose(y, y_ref, atol=5e-3, rtol=5e-3), (
        f"fused f32 path mismatch (max abs err {err})")

    # 2) Chunked fallback path: small explicit tiles exercise row-tile padding,
    #    the intermediate reduction (incl. a padded last I chunk) and epilogue.
    y_c = clip_mlp(x, w1, b1, w2, b2, tm=64, ti=384)
    jax.block_until_ready(y_c)
    err_c = float(jnp.max(jnp.abs(y_c - y_ref)))
    assert jnp.allclose(y_c, y_ref, atol=5e-3, rtol=5e-3), (
        f"chunked path mismatch (max abs err {err_c})")

    # 3) bf16 perf path (recommended on hardware: halves weight HBM traffic,
    #    f32 accumulation kept inside the kernel). Loose tolerance.
    y_bf = clip_mlp(x, w1, b1, w2, b2, compute_dtype=jnp.bfloat16)
    jax.block_until_ready(y_bf)
    err_bf = float(jnp.max(jnp.abs(y_bf.astype(jnp.float32) - y_ref)))
    assert err_bf < 1e-1, f"bf16 path mismatch (max abs err {err_bf})"

    print("KERNEL_OK")
</pallas_src>

<mosaic_0001>
module attributes {stable_mosaic.version = 11 : i64} {
  func.func @_clip_mlp_kernel_fused(%arg0: i32, %arg1: memref<160x128xf32, #tpu.memory_space<vmem>>, %arg2: memref<128x512xf32, #tpu.memory_space<vmem>>, %arg3: memref<1x512xf32, #tpu.memory_space<vmem>>, %arg4: memref<512x128xf32, #tpu.memory_space<vmem>>, %arg5: memref<1x128xf32, #tpu.memory_space<vmem>>, %arg6: memref<160x128xf32, #tpu.memory_space<vmem>>) attributes {dimension_semantics = [#tpu.dimension_semantics<parallel>], iteration_bounds = array<i64: 1>, scalar_prefetch = 0 : i64, scratch_operands = 0 : i64, tpu.core_type = #tpu.core_type<tc>, window_params = [{transform_indices = @transform_0, window_bounds = array<i64: 160, 128>}, {pipeline_mode = #tpu.pipeline_mode<synchronous>, transform_indices = @transform_1, window_bounds = array<i64: 128, 512>}, {pipeline_mode = #tpu.pipeline_mode<synchronous>, transform_indices = @transform_2, window_bounds = array<i64: 1, 512>}, {pipeline_mode = #tpu.pipeline_mode<synchronous>, transform_indices = @transform_3, window_bounds = array<i64: 512, 128>}, {pipeline_mode = #tpu.pipeline_mode<synchronous>, transform_indices = @transform_4, window_bounds = array<i64: 1, 128>}, {transform_indices = @transform_5, window_bounds = array<i64: 160, 128>}]} {
    %c0 = arith.constant 0 : index
    %c0_0 = arith.constant 0 : index
    %0 = vector.load %arg1[%c0, %c0_0] : memref<160x128xf32, #tpu.memory_space<vmem>>, vector<160x128xf32>
    %c0_1 = arith.constant 0 : index
    %c0_2 = arith.constant 0 : index
    %1 = vector.load %arg2[%c0_1, %c0_2] : memref<128x512xf32, #tpu.memory_space<vmem>>, vector<128x512xf32>
    %cst = arith.constant dense<0.000000e+00> : vector<160x512xf32>
    %2 = tpu.matmul %0, %1, %cst {dimension_numbers = #tpu.dot_dimension_numbers<[1], [0], [0], [1], [0, 0, 1, 1], [], []>} : vector<160x128xf32>, vector<128x512xf32>, vector<160x512xf32> -> vector<160x512xf32>
    %c0_3 = arith.constant 0 : index
    %c0_4 = arith.constant 0 : index
    %3 = vector.load %arg3[%c0_3, %c0_4] : memref<1x512xf32, #tpu.memory_space<vmem>>, vector<1x512xf32>
    %4 = vector.broadcast %3 : vector<1x512xf32> to vector<160x512xf32>
    %5 = arith.addf %2, %4 : vector<160x512xf32>
    %cst_5 = arith.constant 1.702000e+00 : f32
    %6 = vector.broadcast %cst_5 : f32 to vector<160x512xf32>
    %7 = arith.mulf %6, %5 : vector<160x512xf32>
    %8 = arith.negf %7 : vector<160x512xf32>
    %9 = math.exp %8 : vector<160x512xf32>
    %cst_6 = arith.constant 1.000000e+00 : f32
    %10 = vector.broadcast %cst_6 : f32 to vector<160x512xf32>
    %11 = arith.addf %10, %9 : vector<160x512xf32>
    %12 = arith.divf %10, %11 : vector<160x512xf32>
    %13 = arith.mulf %5, %12 : vector<160x512xf32>
    %c0_7 = arith.constant 0 : index
    %c0_8 = arith.constant 0 : index
    %14 = vector.load %arg4[%c0_7, %c0_8] : memref<512x128xf32, #tpu.memory_space<vmem>>, vector<512x128xf32>
    %cst_9 = arith.constant dense<0.000000e+00> : vector<160x128xf32>
    %15 = tpu.matmul %13, %14, %cst_9 {dimension_numbers = #tpu.dot_dimension_numbers<[1], [0], [0], [1], [0, 0, 1, 1], [], []>} : vector<160x512xf32>, vector<512x128xf32>, vector<160x128xf32> -> vector<160x128xf32>
    %c0_10 = arith.constant 0 : index
    %c0_11 = arith.constant 0 : index
    %16 = vector.load %arg5[%c0_10, %c0_11] : memref<1x128xf32, #tpu.memory_space<vmem>>, vector<1x128xf32>
    %17 = vector.broadcast %16 : vector<1x128xf32> to vector<160x128xf32>
    %18 = arith.addf %15, %17 : vector<160x128xf32>
    %c0_12 = arith.constant 0 : index
    %c0_13 = arith.constant 0 : index
    %19 = vector.load %arg6[%c0_12, %c0_13] : memref<160x128xf32, #tpu.memory_space<vmem>>, vector<160x128xf32>
    tpu.vector_store %arg6[%c0_12, %c0_13], %18 {strides = array<i32>} : memref<160x128xf32, #tpu.memory_space<vmem>>, vector<160x128xf32>,
    return
  }
  func.func @transform_0(%arg0: i32) -> (i32, i32) {
    %c0_i32 = arith.constant 0 : i32
    %c0_i32_0 = arith.constant 0 : i32
    return %arg0, %c0_i32 : i32, i32
  }
  func.func @transform_1(%arg0: i32) -> (i32, i32) {
    %c0_i32 = arith.constant 0 : i32
    %c0_i32_0 = arith.constant 0 : i32
    %c0_i32_1 = arith.constant 0 : i32
    return %c0_i32, %c0_i32_0 : i32, i32
  }
  func.func @transform_2(%arg0: i32) -> (i32, i32) {
    %c0_i32 = arith.constant 0 : i32
    %c0_i32_0 = arith.constant 0 : i32
    %c0_i32_1 = arith.constant 0 : i32
    return %c0_i32, %c0_i32_0 : i32, i32
  }
  func.func @transform_3(%arg0: i32) -> (i32, i32) {
    %c0_i32 = arith.constant 0 : i32
    %c0_i32_0 = arith.constant 0 : i32
    %c0_i32_1 = arith.constant 0 : i32
    return %c0_i32, %c0_i32_0 : i32, i32
  }
  func.func @transform_4(%arg0: i32) -> (i32, i32) {
    %c0_i32 = arith.constant 0 : i32
    %c0_i32_0 = arith.constant 0 : i32
    %c0_i32_1 = arith.constant 0 : i32
    return %c0_i32, %c0_i32_0 : i32, i32
  }
  func.func @transform_5(%arg0: i32) -> (i32, i32) {
    %c0_i32 = arith.constant 0 : i32
    %c0_i32_0 = arith.constant 0 : i32
    return %arg0, %c0_i32 : i32, i32
  }
}

</mosaic_0001>

<llo_original>
// kernel: clip_mlp.1
$region0: #{clip_mlp.1}
  #allocation0 [shape = 'u32[]', space=smem, size = 0x4, offset = 0x4, fixed_abs, tag = 'smem constant byte address 0x4 - core index']
  #allocation1 [shape = 'u32[144,128]{1,0:T(1,128)}', space=vmem, size = 0x12000, scoped, tag = 'internal scratch']
  %s0 = inlined_call_operand.vmem [shape: f32[160,128], index: 0, kind: input, shape index: {}]
  %s1 = inlined_call_operand.vmem [shape: f32[128,512], index: 1, kind: input, shape index: {}]
  %s2 = inlined_call_operand.vmem [shape: f32[1,512], index: 2, kind: input, shape index: {}]
  %s3 = inlined_call_operand.hbm [shape: f32[512,128], index: 3, kind: input, shape index: {}]
  %s4 = inlined_call_operand.vmem [shape: f32[1,128], index: 4, kind: input, shape index: {}]
  %s5 = inlined_call_operand.vmem [shape: f32[160,128], index: 5, kind: output, shape index: {}]
  %s6 = sld [smem:[#allocation0]]
  $region34: #{clip_mlp.1} parent=0
    _
  %s8 = ssub.s32 1, %s6
  %s9 = scalar_select 0, %s8, %s6
  $region1: #{clip_mlp.1} parent=0
    #allocation2 [shape = 'u8[262144]{0}', space=vmem, size = 0x40000, scoped, tag = 'input window, operand 3, single buffered']
    #allocation3 [shape = 's32[1]{0}', space=sflag, size = 0x4, scoped, tag = 'scoped memory for clip_mlp.1']
    %10 = vsyncpa [#allocation3], 0
    // Predicated region
    $region2: #{clip_mlp.1} parent=1 // pred_check
      _
    $region3: #{clip_mlp.1} parent=1 // pred_check_branch
      %12 = sbr.rel (0) target = $region5
    $region4: #{clip_mlp.1} parent=1 // pred_region
      _
    $region5: #{clip_mlp.1} parent=1 // pred_fallthru
      _
    // Predicated region
    $region6: #{clip_mlp.1} parent=1 // pred_check
      _
    $region7: #{clip_mlp.1} parent=1 // pred_check_branch
      %14 = sbr.rel (0) target = $region9
    $region8: #{clip_mlp.1} parent=1 // pred_region
      _
    $region9: #{clip_mlp.1} parent=1 // pred_fallthru
      _
    // Predicated region
    $region10: #{clip_mlp.1} parent=1 // pred_check
      _
    $region11: #{clip_mlp.1} parent=1 // pred_check_branch
      %16 = sbr.rel (0) target = $region13
    $region12: #{clip_mlp.1} parent=1 // pred_region
      _
    $region13: #{clip_mlp.1} parent=1 // pred_fallthru
      _
    // Predicated region
    $region14: #{clip_mlp.1} parent=1 // pred_check
      _
    $region15: #{clip_mlp.1} parent=1 // pred_check_branch
      %18 = sbr.rel (0) target = $region17
    $region16: #{clip_mlp.1} parent=1 // pred_region
      %s20 = ssub.s32 8192, 8192
      %21 = vsyncadd [#allocation3], %s20
      %s22 = sshll.u32 [#allocation2], 4
      %s23 = int_to_ptr.vmem [resolvable:$true] %s22
      %28 = dma.hbm_to_vmem [thread:$0]  %s3, 8192, %s23, [#allocation3], 128, 128, 8
    $region17: #{clip_mlp.1} parent=1 // pred_fallthru
      _
    // Predicated region
    $region18: #{clip_mlp.1} parent=1 // pred_check
      _
    $region19: #{clip_mlp.1} parent=1 // pred_check_branch
      %30 = sbr.rel (0) target = $region21
    $region20: #{clip_mlp.1} parent=1 // pred_region
      _
    $region21: #{clip_mlp.1} parent=1 // pred_fallthru
      _
    // Predicated region
    $region22: #{clip_mlp.1} parent=1 // pred_check
      _
    $region23: #{clip_mlp.1} parent=1 // pred_check_branch
      %32 = sbr.rel (0) target = $region25
    $region24: #{clip_mlp.1} parent=1 // pred_region
      %33 = dma.done [#allocation3], 8192
    $region25: #{clip_mlp.1} parent=1 // pred_fallthru
      _
    %v34 = vld [vmem:[%s0] sm:$0xff]
    %v35 = vld [vmem:[%s0 + $0x8] sm:$0xff]
    %v36 = vld [vmem:[%s0 + $0x10] sm:$0xff]
    %v37 = vld [vmem:[%s0 + $0x18] sm:$0xff]
    %v38 = vld [vmem:[%s0 + $0x20] sm:$0xff]
    %v39 = vld [vmem:[%s0 + $0x28] sm:$0xff]
    %v40 = vld [vmem:[%s0 + $0x30] sm:$0xff]
    %v41 = vld [vmem:[%s0 + $0x38] sm:$0xff]
    %v42 = vld [vmem:[%s0 + $0x40] sm:$0xff]
    %v43 = vld [vmem:[%s0 + $0x48] sm:$0xff]
    %v44 = vld [vmem:[%s0 + $0x50] sm:$0xff]
    %v45 = vld [vmem:[%s0 + $0x58] sm:$0xff]
    %v46 = vld [vmem:[%s0 + $0x60] sm:$0xff]
    %v47 = vld [vmem:[%s0 + $0x68] sm:$0xff]
    %v48 = vld [vmem:[%s0 + $0x70] sm:$0xff]
    %v49 = vld [vmem:[%s0 + $0x78] sm:$0xff]
    %v50 = vld [vmem:[%s0 + $0x80] sm:$0xff]
    %v51 = vld [vmem:[%s0 + $0x88] sm:$0xff]
    %v52 = vld [vmem:[%s0 + $0x90] sm:$0xff]
    %v53 = vld [vmem:[%s0 + $0x98] sm:$0xff]
    %v54 = vld [vmem:[%s1] sm:$0xff]
    %v55 = vld [vmem:[%s1 + $0x8] sm:$0xff]
    %v56 = vld [vmem:[%s1 + $0x10] sm:$0xff]
    %v57 = vld [vmem:[%s1 + $0x18] sm:$0xff]
    %v58 = vld [vmem:[%s1 + $0x20] sm:$0xff]
    %v59 = vld [vmem:[%s1 + $0x28] sm:$0xff]
    %v60 = vld [vmem:[%s1 + $0x30] sm:$0xff]
    %v61 = vld [vmem:[%s1 + $0x38] sm:$0xff]
    %v62 = vld [vmem:[%s1 + $0x40] sm:$0xff]
    %v63 = vld [vmem:[%s1 + $0x48] sm:$0xff]
    %v64 = vld [vmem:[%s1 + $0x50] sm:$0xff]
    %v65 = vld [vmem:[%s1 + $0x58] sm:$0xff]
    %v66 = vld [vmem:[%s1 + $0x60] sm:$0xff]
    %v67 = vld [vmem:[%s1 + $0x68] sm:$0xff]
    %v68 = vld [vmem:[%s1 + $0x70] sm:$0xff]
    %v69 = vld [vmem:[%s1 + $0x78] sm:$0xff]
    %v70 = vld [vmem:[%s1 + $0x80] sm:$0xff]
    %v71 = vld [vmem:[%s1 + $0x88] sm:$0xff]
    %v72 = vld [vmem:[%s1 + $0x90] sm:$0xff]
    %v73 = vld [vmem:[%s1 + $0x98] sm:$0xff]
    %v74 = vld [vmem:[%s1 + $0xa0] sm:$0xff]
    %v75 = vld [vmem:[%s1 + $0xa8] sm:$0xff]
    %v76 = vld [vmem:[%s1 + $0xb0] sm:$0xff]
    %v77 = vld [vmem:[%s1 + $0xb8] sm:$0xff]
    %v78 = vld [vmem:[%s1 + $0xc0] sm:$0xff]
    %v79 = vld [vmem:[%s1 + $0xc8] sm:$0xff]
    %v80 = vld [vmem:[%s1 + $0xd0] sm:$0xff]
    %v81 = vld [vmem:[%s1 + $0xd8] sm:$0xff]
    %v82 = vld [vmem:[%s1 + $0xe0] sm:$0xff]
    %v83 = vld [vmem:[%s1 + $0xe8] sm:$0xff]
    %v84 = vld [vmem:[%s1 + $0xf0] sm:$0xff]
    %v85 = vld [vmem:[%s1 + $0xf8] sm:$0xff]
    %v86 = vld [vmem:[%s1 + $0x100] sm:$0xff]
    %v87 = vld [vmem:[%s1 + $0x108] sm:$0xff]
    %v88 = vld [vmem:[%s1 + $0x110] sm:$0xff]
    %v89 = vld [vmem:[%s1 + $0x118] sm:$0xff]
    %v90 = vld [vmem:[%s1 + $0x120] sm:$0xff]
    %v91 = vld [vmem:[%s1 + $0x128] sm:$0xff]
    %v92 = vld [vmem:[%s1 + $0x130] sm:$0xff]
    %v93 = vld [vmem:[%s1 + $0x138] sm:$0xff]
    %v94 = vld [vmem:[%s1 + $0x140] sm:$0xff]
    %v95 = vld [vmem:[%s1 + $0x148] sm:$0xff]
    %v96 = vld [vmem:[%s1 + $0x150] sm:$0xff]
    %v97 = vld [vmem:[%s1 + $0x158] sm:$0xff]
    %v98 = vld [vmem:[%s1 + $0x160] sm:$0xff]
    %v99 = vld [vmem:[%s1 + $0x168] sm:$0xff]
    %v100 = vld [vmem:[%s1 + $0x170] sm:$0xff]
    %v101 = vld [vmem:[%s1 + $0x178] sm:$0xff]
    %v102 = vld [vmem:[%s1 + $0x180] sm:$0xff]
    %v103 = vld [vmem:[%s1 + $0x188] sm:$0xff]
    %v104 = vld [vmem:[%s1 + $0x190] sm:$0xff]
    %v105 = vld [vmem:[%s1 + $0x198] sm:$0xff]
    %v106 = vld [vmem:[%s1 + $0x1a0] sm:$0xff]
    %v107 = vld [vmem:[%s1 + $0x1a8] sm:$0xff]
    %v108 = vld [vmem:[%s1 + $0x1b0] sm:$0xff]
    %v109 = vld [vmem:[%s1 + $0x1b8] sm:$0xff]
    %v110 = vld [vmem:[%s1 + $0x1c0] sm:$0xff]
    %v111 = vld [vmem:[%s1 + $0x1c8] sm:$0xff]
    %v112 = vld [vmem:[%s1 + $0x1d0] sm:$0xff]
    %v113 = vld [vmem:[%s1 + $0x1d8] sm:$0xff]
    %v114 = vld [vmem:[%s1 + $0x1e0] sm:$0xff]
    %v115 = vld [vmem:[%s1 + $0x1e8] sm:$0xff]
    %v116 = vld [vmem:[%s1 + $0x1f0] sm:$0xff]
    %v117 = vld [vmem:[%s1 + $0x1f8] sm:$0xff]
    %v118 = vld [vmem:[%s2] sm:$0xf]
    %v120 = vlaneseq
    %v121 = vshrl.u32 %v120, 7
    %v122 = vsub.s32 0, %v121
    %v123 = vrot.slane %v118, %v122
    %v124 = vlaneseq
    %v125 = vshrl.u32 %v124, 7
    %v126 = vsub.s32 1, %v125
    %v127 = vrot.slane %v118, %v126
    %v128 = vlaneseq
    %v129 = vshrl.u32 %v128, 7
    %v130 = vsub.s32 2, %v129
    %v131 = vrot.slane %v118, %v130
    %v132 = vlaneseq
    %v133 = vshrl.u32 %v132, 7
    %v134 = vsub.s32 3, %v133
    %v135 = vrot.slane %v118, %v134
    %140 = vmatprep.subr.mxu0 %v55
    %141 = vmatpush1.msra.mxu0 %v54
    %142 = vmatprep.subr.mxu0 %v59
    %143 = vmatpush1.msra.mxu0 %v58
    %144 = vmatprep.subr.mxu0 %v63
    %145 = vmatpush1.msra.mxu0 %v62
    %146 = vmatprep.subr.mxu0 %v67
    %147 = vmatpush1.msra.mxu0 %v66
    %148 = vmatprep.subr.mxu0 %v71
    %149 = vmatpush1.msra.mxu0 %v70
    %150 = vmatprep.subr.mxu0 %v75
    %151 = vmatpush1.msra.mxu0 %v74
    %152 = vmatprep.subr.mxu0 %v79
    %153 = vmatpush1.msra.mxu0 %v78
    %154 = vmatprep.subr.mxu0 %v83
    %155 = vmatpush1.msra.mxu0 %v82
    %156 = vmatprep.subr.mxu0 %v87
    %157 = vmatpush1.msra.mxu0 %v86
    %158 = vmatprep.subr.mxu0 %v91
    %159 = vmatpush1.msra.mxu0 %v90
    %160 = vmatprep.subr.mxu0 %v95
    %161 = vmatpush1.msra.mxu0 %v94
    %162 = vmatprep.subr.mxu0 %v99
    %163 = vmatpush1.msra.mxu0 %v98
    %164 = vmatprep.subr.mxu0 %v103
    %165 = vmatpush1.msra.mxu0 %v102
    %166 = vmatprep.subr.mxu0 %v107
    %167 = vmatpush1.msra.mxu0 %v106
    %168 = vmatprep.subr.mxu0 %v111
    %169 = vmatpush1.msra.mxu0 %v110
    %170 = vmatprep.subr.mxu0 %v115
    %171 = vmatpush1.msra.mxu0 %v114
    %172 = vmatprep.subr.mxu0 0.0
    %173 = vmatpush1.msra.mxu0 0.0
    %174 = vmatprep.subr.mxu0 0.0
    %175 = vmatpush1.msra.mxu0 0.0
    %176 = vmatprep.subr.mxu0 0.0
    %177 = vmatpush1.msra.mxu0 0.0
    %178 = vmatprep.subr.mxu0 0.0
    %179 = vmatpush1.msra.mxu0 0.0
    %180 = vmatprep.subr.mxu0 0.0
    %181 = vmatpush1.msra.mxu0 0.0
    %182 = vmatprep.subr.mxu0 0.0
    %183 = vmatpush1.msra.mxu0 0.0
    %184 = vmatprep.subr.mxu0 0.0
    %185 = vmatpush1.msra.mxu0 0.0
    %186 = vmatprep.subr.mxu0 0.0
    %187 = vmatpush1.msra.mxu0 0.0
    %188 = vmatprep.subr.mxu0 0.0
    %189 = vmatpush1.msra.mxu0 0.0
    %190 = vmatprep.subr.mxu0 0.0
    %191 = vmatpush1.msra.mxu0 0.0
    %192 = vmatprep.subr.mxu0 0.0
    %193 = vmatpush1.msra.mxu0 0.0
    %194 = vmatprep.subr.mxu0 0.0
    %195 = vmatpush1.msra.mxu0 0.0
    %196 = vmatprep.subr.mxu0 0.0
    %197 = vmatpush1.msra.mxu0 0.0
    %198 = vmatprep.subr.mxu0 0.0
    %199 = vmatpush1.msra.mxu0 0.0
    %200 = vmatprep.subr.mxu0 0.0
    %201 = vmatpush1.msra.mxu0 0.0
    %202 = vmatprep.subr.mxu0 0.0
    %203 = vmatpush1.msra.mxu0 0.0
    %204 = vmatprep.mubr.f32.mxu0 0.0
    %205 = vmatmul.mubr.f32.gmra.mrb[0].mxu0 %v34
    %v206 = vpop.f32.mrb[0].mxu0
    %v207 = vadd.f32 %v123, %v206
    %v208 = vpop.f32.mrb[0].mxu0
    %v209 = vadd.f32 %v127, %v208
    %210 = vmatprep.mubr.f32.mxu0 0.0
    %211 = vmatmul.mubr.f32.gmra.mrb[0].mxu0 %v35
    %v212 = vpop.f32.mrb[0].mxu0
    %v213 = vadd.f32 %v123, %v212
    %v214 = vpop.f32.mrb[0].mxu0
    %v215 = vadd.f32 %v127, %v214
    %216 = vmatprep.mubr.f32.mxu0 0.0
    %217 = vmatmul.mubr.f32.gmra.mrb[0].mxu0 %v36
    %v218 = vpop.f32.mrb[0].mxu0
    %v219 = vadd.f32 %v123, %v218
    %v220 = vpop.f32.mrb[0].mxu0
    %v221 = vadd.f32 %v127, %v220
    %222 = vmatprep.mubr.f32.mxu0 0.0
    %223 = vmatmul.mubr.f32.gmra.mrb[0].mxu0 %v37
    %v224 = vpop.f32.mrb[0].mxu0
    %v225 = vadd.f32 %v123, %v224
    %v226 = vpop.f32.mrb[0].mxu0
    %v227 = vadd.f32 %v127, %v226
    %228 = vmatprep.mubr.f32.mxu0 0.0
    %229 = vmatmul.mubr.f32.gmra.mrb[0].mxu0 %v38
    %v230 = vpop.f32.mrb[0].mxu0
    %v231 = vadd.f32 %v123, %v230
    %v232 = vpop.f32.mrb[0].mxu0
    %v233 = vadd.f32 %v127, %v232
    %234 = vmatprep.mubr.f32.mxu0 0.0
    %235 = vmatmul.mubr.f32.gmra.mrb[0].mxu0 %v39
    %v236 = vpop.f32.mrb[0].mxu0
    %v237 = vadd.f32 %v123, %v236
    %v238 = vpop.f32.mrb[0].mxu0
    %v239 = vadd.f32 %v127, %v238
    %240 = vmatprep.mubr.f32.mxu0 0.0
    %241 = vmatmul.mubr.f32.gmra.mrb[0].mxu0 %v40
    %v242 = vpop.f32.mrb[0].mxu0
    %v243 = vadd.f32 %v123, %v242
    %v244 = vpop.f32.mrb[0].mxu0
    %v245 = vadd.f32 %v127, %v244
    %246 = vmatprep.mubr.f32.mxu0 0.0
    %247 = vmatmul.mubr.f32.gmra.mrb[0].mxu0 %v41
    %v248 = vpop.f32.mrb[0].mxu0
    %v249 = vadd.f32 %v123, %v248
    %v250 = vpop.f32.mrb[0].mxu0
    %v251 = vadd.f32 %v127, %v250
    %252 = vmatprep.mubr.f32.mxu0 0.0
    %253 = vmatmul.mubr.f32.gmra.mrb[0].mxu0 %v42
    %v254 = vpop.f32.mrb[0].mxu0
    %v255 = vadd.f32 %v123, %v254
    %v256 = vpop.f32.mrb[0].mxu0
    %v257 = vadd.f32 %v127, %v256
    %258 = vmatprep.mubr.f32.mxu0 0.0
    %259 = vmatmul.mubr.f32.gmra.mrb[0].mxu0 %v43
    %v260 = vpop.f32.mrb[0].mxu0
    %v261 = vadd.f32 %v123, %v260
    %v262 = vpop.f32.mrb[0].mxu0
    %v263 = vadd.f32 %v127, %v262
    %264 = vmatprep.mubr.f32.mxu0 0.0
    %265 = vmatmul.mubr.f32.gmra.mrb[0].mxu0 %v44
    %v266 = vpop.f32.mrb[0].mxu0
    %v267 = vadd.f32 %v123, %v266
    %v268 = vpop.f32.mrb[0].mxu0
    %v269 = vadd.f32 %v127, %v268
    %270 = vmatprep.mubr.f32.mxu0 0.0
    %271 = vmatmul.mubr.f32.gmra.mrb[0].mxu0 %v45
    %v272 = vpop.f32.mrb[0].mxu0
    %v273 = vadd.f32 %v123, %v272
    %v274 = vpop.f32.mrb[0].mxu0
    %v275 = vadd.f32 %v127, %v274
    %276 = vmatprep.mubr.f32.mxu0 0.0
    %277 = vmatmul.mubr.f32.gmra.mrb[0].mxu0 %v46
    %v278 = vpop.f32.mrb[0].mxu0
    %v279 = vadd.f32 %v123, %v278
    %v280 = vpop.f32.mrb[0].mxu0
    %v281 = vadd.f32 %v127, %v280
    %282 = vmatprep.mubr.f32.mxu0 0.0
    %283 = vmatmul.mubr.f32.gmra.mrb[0].mxu0 %v47
    %v284 = vpop.f32.mrb[0].mxu0
    %v285 = vadd.f32 %v123, %v284
    %v286 = vpop.f32.mrb[0].mxu0
    %v287 = vadd.f32 %v127, %v286
    %288 = vmatprep.mubr.f32.mxu0 0.0
    %289 = vmatmul.mubr.f32.gmra.mrb[0].mxu0 %v48
    %v290 = vpop.f32.mrb[0].mxu0
    %v291 = vadd.f32 %v123, %v290
    %v292 = vpop.f32.mrb[0].mxu0
    %v293 = vadd.f32 %v127, %v292
    %294 = vmatprep.mubr.f32.mxu0 0.0
    %295 = vmatmul.mubr.f32.gmra.mrb[0].mxu0 %v49
    %v296 = vpop.f32.mrb[0].mxu0
    %v297 = vadd.f32 %v123, %v296
    %v298 = vpop.f32.mrb[0].mxu0
    %v299 = vadd.f32 %v127, %v298
    %300 = vmatprep.mubr.f32.mxu0 0.0
    %301 = vmatmul.mubr.f32.gmra.mrb[0].mxu0 %v50
    %v302 = vpop.f32.mrb[0].mxu0
    %v303 = vadd.f32 %v123, %v302
    %v304 = vpop.f32.mrb[0].mxu0
    %v305 = vadd.f32 %v127, %v304
    %306 = vmatprep.mubr.f32.mxu0 0.0
    %307 = vmatmul.mubr.f32.gmra.mrb[0].mxu0 %v51
    %v308 = vpop.f32.mrb[0].mxu0
    %v309 = vadd.f32 %v123, %v308
    %v310 = vpop.f32.mrb[0].mxu0
    %v311 = vadd.f32 %v127, %v310
    %312 = vmatprep.mubr.f32.mxu0 0.0
    %313 = vmatmul.mubr.f32.gmra.mrb[0].mxu0 %v52
    %v314 = vpop.f32.mrb[0].mxu0
    %v315 = vadd.f32 %v123, %v314
    %v316 = vpop.f32.mrb[0].mxu0
    %v317 = vadd.f32 %v127, %v316
    %318 = vmatprep.mubr.f32.mxu0 0.0
    %319 = vmatmul.mubr.f32.gmra.mrb[0].mxu0 %v53
    %v320 = vpop.f32.mrb[0].mxu0
    %v321 = vadd.f32 %v123, %v320
    %v322 = vpop.f32.mrb[0].mxu0
    %v323 = vadd.f32 %v127, %v322
    %324 = vdwg.mxu0
    %325 = vmatprep.subr.mxu0 %v57
    %326 = vmatpush1.msra.mxu0 %v56
    %327 = vmatprep.subr.mxu0 %v61
    %328 = vmatpush1.msra.mxu0 %v60
    %329 = vmatprep.subr.mxu0 %v65
    %330 = vmatpush1.msra.mxu0 %v64
    %331 = vmatprep.subr.mxu0 %v69
    %332 = vmatpush1.msra.mxu0 %v68
    %333 = vmatprep.subr.mxu0 %v73
    %334 = vmatpush1.msra.mxu0 %v72
    %335 = vmatprep.subr.mxu0 %v77
    %336 = vmatpush1.msra.mxu0 %v76
    %337 = vmatprep.subr.mxu0 %v81
    %338 = vmatpush1.msra.mxu0 %v80
    %339 = vmatprep.subr.mxu0 %v85
    %340 = vmatpush1.msra.mxu0 %v84
    %341 = vmatprep.subr.mxu0 %v89
    %342 = vmatpush1.msra.mxu0 %v88
    %343 = vmatprep.subr.mxu0 %v93
    %344 = vmatpush1.msra.mxu0 %v92
    %345 = vmatprep.subr.mxu0 %v97
    %346 = vmatpush1.msra.mxu0 %v96
    %347 = vmatprep.subr.mxu0 %v101
    %348 = vmatpush1.msra.mxu0 %v100
    %349 = vmatprep.subr.mxu0 %v105
    %350 = vmatpush1.msra.mxu0 %v104
    %351 = vmatprep.subr.mxu0 %v109
    %352 = vmatpush1.msra.mxu0 %v108
    %353 = vmatprep.subr.mxu0 %v113
    %354 = vmatpush1.msra.mxu0 %v112
    %355 = vmatprep.subr.mxu0 %v117
    %356 = vmatpush1.msra.mxu0 %v116
    %357 = vmatprep.subr.mxu0 0.0
    %358 = vmatpush1.msra.mxu0 0.0
    %359 = vmatprep.subr.mxu0 0.0
    %360 = vmatpush1.msra.mxu0 0.0
    %361 = vmatprep.subr.mxu0 0.0
    %362 = vmatpush1.msra.mxu0 0.0
    %363 = vmatprep.subr.mxu0 0.0
    %364 = vmatpush1.msra.mxu0 0.0
    %365 = vmatprep.subr.mxu0 0.0
    %366 = vmatpush1.msra.mxu0 0.0
    %367 = vmatprep.subr.mxu0 0.0
    %368 = vmatpush1.msra.mxu0 0.0
    %369 = vmatprep.subr.mxu0 0.0
    %370 = vmatpush1.msra.mxu0 0.0
    %371 = vmatprep.subr.mxu0 0.0
    %372 = vmatpush1.msra.mxu0 0.0
    %373 = vmatprep.subr.mxu0 0.0
    %374 = vmatpush1.msra.mxu0 0.0
    %375 = vmatprep.subr.mxu0 0.0
    %376 = vmatpush1.msra.mxu0 0.0
    %377 = vmatprep.subr.mxu0 0.0
    %378 = vmatpush1.msra.mxu0 0.0
    %379 = vmatprep.subr.mxu0 0.0
    %380 = vmatpush1.msra.mxu0 0.0
    %381 = vmatprep.subr.mxu0 0.0
    %382 = vmatpush1.msra.mxu0 0.0
    %383 = vmatprep.subr.mxu0 0.0
    %384 = vmatpush1.msra.mxu0 0.0
    %385 = vmatprep.subr.mxu0 0.0
    %386 = vmatpush1.msra.mxu0 0.0
    %387 = vmatprep.subr.mxu0 0.0
    %388 = vmatpush1.msra.mxu0 0.0
    %389 = vmatprep.mubr.f32.mxu0 0.0
    %390 = vmatmul.mubr.f32.gmra.mrb[0].mxu0 %v34
    %v391 = vpop.f32.mrb[0].mxu0
    %v392 = vadd.f32 %v131, %v391
    %v393 = vpop.f32.mrb[0].mxu0
    %v394 = vadd.f32 %v135, %v393
    %395 = vmatprep.mubr.f32.mxu0 0.0
    %396 = vmatmul.mubr.f32.gmra.mrb[0].mxu0 %v35
    %v397 = vpop.f32.mrb[0].mxu0
    %v398 = vadd.f32 %v131, %v397
    %v399 = vpop.f32.mrb[0].mxu0
    %v400 = vadd.f32 %v135, %v399
    %401 = vmatprep.mubr.f32.mxu0 0.0
    %402 = vmatmul.mubr.f32.gmra.mrb[0].mxu0 %v36
    %v403 = vpop.f32.mrb[0].mxu0
    %v404 = vadd.f32 %v131, %v403
    %v405 = vpop.f32.mrb[0].mxu0
    %v406 = vadd.f32 %v135, %v405
    %407 = vmatprep.mubr.f32.mxu0 0.0
    %408 = vmatmul.mubr.f32.gmra.mrb[0].mxu0 %v37
    %v409 = vpop.f32.mrb[0].mxu0
    %v410 = vadd.f32 %v131, %v409
    %v411 = vpop.f32.mrb[0].mxu0
    %v412 = vadd.f32 %v135, %v411
    %413 = vmatprep.mubr.f32.mxu0 0.0
    %414 = vmatmul.mubr.f32.gmra.mrb[0].mxu0 %v38
    %v415 = vpop.f32.mrb[0].mxu0
    %v416 = vadd.f32 %v131, %v415
    %v417 = vpop.f32.mrb[0].mxu0
    %v418 = vadd.f32 %v135, %v417
    %419 = vmatprep.mubr.f32.mxu0 0.0
    %420 = vmatmul.mubr.f32.gmra.mrb[0].mxu0 %v39
    %v421 = vpop.f32.mrb[0].mxu0
    %v422 = vadd.f32 %v131, %v421
    %v423 = vpop.f32.mrb[0].mxu0
    %v424 = vadd.f32 %v135, %v423
    %425 = vmatprep.mubr.f32.mxu0 0.0
    %426 = vmatmul.mubr.f32.gmra.mrb[0].mxu0 %v40
    %v427 = vpop.f32.mrb[0].mxu0
    %v428 = vadd.f32 %v131, %v427
    %v429 = vpop.f32.mrb[0].mxu0
    %v430 = vadd.f32 %v135, %v429
    %431 = vmatprep.mubr.f32.mxu0 0.0
    %432 = vmatmul.mubr.f32.gmra.mrb[0].mxu0 %v41
    %v433 = vpop.f32.mrb[0].mxu0
    %v434 = vadd.f32 %v131, %v433
    %v435 = vpop.f32.mrb[0].mxu0
    %v436 = vadd.f32 %v135, %v435
    %437 = vmatprep.mubr.f32.mxu0 0.0
    %438 = vmatmul.mubr.f32.gmra.mrb[0].mxu0 %v42
    %v439 = vpop.f32.mrb[0].mxu0
    %v440 = vadd.f32 %v131, %v439
    %v441 = vpop.f32.mrb[0].mxu0
    %v442 = vadd.f32 %v135, %v441
    %443 = vmatprep.mubr.f32.mxu0 0.0
    %444 = vmatmul.mubr.f32.gmra.mrb[0].mxu0 %v43
    %v445 = vpop.f32.mrb[0].mxu0
    %v446 = vadd.f32 %v131, %v445
    %v447 = vpop.f32.mrb[0].mxu0
    %v448 = vadd.f32 %v135, %v447
    %449 = vmatprep.mubr.f32.mxu0 0.0
    %450 = vmatmul.mubr.f32.gmra.mrb[0].mxu0 %v44
    %v451 = vpop.f32.mrb[0].mxu0
    %v452 = vadd.f32 %v131, %v451
    %v453 = vpop.f32.mrb[0].mxu0
    %v454 = vadd.f32 %v135, %v453
    %455 = vmatprep.mubr.f32.mxu0 0.0
    %456 = vmatmul.mubr.f32.gmra.mrb[0].mxu0 %v45
    %v457 = vpop.f32.mrb[0].mxu0
    %v458 = vadd.f32 %v131, %v457
    %v459 = vpop.f32.mrb[0].mxu0
    %v460 = vadd.f32 %v135, %v459
    %461 = vmatprep.mubr.f32.mxu0 0.0
    %462 = vmatmul.mubr.f32.gmra.mrb[0].mxu0 %v46
    %v463 = vpop.f32.mrb[0].mxu0
    %v464 = vadd.f32 %v131, %v463
    %v465 = vpop.f32.mrb[0].mxu0
    %v466 = vadd.f32 %v135, %v465
    %467 = vmatprep.mubr.f32.mxu0 0.0
    %468 = vmatmul.mubr.f32.gmra.mrb[0].mxu0 %v47
    %v469 = vpop.f32.mrb[0].mxu0
    %v470 = vadd.f32 %v131, %v469
    %v471 = vpop.f32.mrb[0].mxu0
    %v472 = vadd.f32 %v135, %v471
    %473 = vmatprep.mubr.f32.mxu0 0.0
    %474 = vmatmul.mubr.f32.gmra.mrb[0].mxu0 %v48
    %v475 = vpop.f32.mrb[0].mxu0
    %v476 = vadd.f32 %v131, %v475
    %v477 = vpop.f32.mrb[0].mxu0
    %v478 = vadd.f32 %v135, %v477
    %479 = vmatprep.mubr.f32.mxu0 0.0
    %480 = vmatmul.mubr.f32.gmra.mrb[0].mxu0 %v49
    %v481 = vpop.f32.mrb[0].mxu0
    %v482 = vadd.f32 %v131, %v481
    %v483 = vpop.f32.mrb[0].mxu0
    %v484 = vadd.f32 %v135, %v483
    %485 = vmatprep.mubr.f32.mxu0 0.0
    %486 = vmatmul.mubr.f32.gmra.mrb[0].mxu0 %v50
    %v487 = vpop.f32.mrb[0].mxu0
    %v488 = vadd.f32 %v131, %v487
    %v489 = vpop.f32.mrb[0].mxu0
    %v490 = vadd.f32 %v135, %v489
    %491 = vmatprep.mubr.f32.mxu0 0.0
    %492 = vmatmul.mubr.f32.gmra.mrb[0].mxu0 %v51
    %v493 = vpop.f32.mrb[0].mxu0
    %v494 = vadd.f32 %v131, %v493
    %v495 = vpop.f32.mrb[0].mxu0
    %v496 = vadd.f32 %v135, %v495
    %497 = vmatprep.mubr.f32.mxu0 0.0
    %498 = vmatmul.mubr.f32.gmra.mrb[0].mxu0 %v52
    %v499 = vpop.f32.mrb[0].mxu0
    %v500 = vadd.f32 %v131, %v499
    %v501 = vpop.f32.mrb[0].mxu0
    %v502 = vadd.f32 %v135, %v501
    %503 = vmatprep.mubr.f32.mxu0 0.0
    %504 = vmatmul.mubr.f32.gmra.mrb[0].mxu0 %v53
    %v505 = vpop.f32.mrb[0].mxu0
    %v506 = vadd.f32 %v131, %v505
    %v507 = vpop.f32.mrb[0].mxu0
    %v508 = vadd.f32 %v135, %v507
    %509 = vdwg.mxu0
    %v510 = vmul.f32 %v207, 1.702
    %v511 = vmul.f32 %v209, 1.702
    %v512 = vmul.f32 %v392, 1.702
    %v513 = vmul.f32 %v394, 1.702
    %v514 = vmul.f32 %v213, 1.702
    %v515 = vmul.f32 %v215, 1.702
    %v516 = vmul.f32 %v398, 1.702
    %v517 = vmul.f32 %v400, 1.702
    %v518 = vmul.f32 %v219, 1.702
    %v519 = vmul.f32 %v221, 1.702
    %v520 = vmul.f32 %v404, 1.702
    %v521 = vmul.f32 %v406, 1.702
    %v522 = vmul.f32 %v225, 1.702
    %v523 = vmul.f32 %v227, 1.702
    %v524 = vmul.f32 %v410, 1.702
    %v525 = vmul.f32 %v412, 1.702
    %v526 = vmul.f32 %v231, 1.702
    %v527 = vmul.f32 %v233, 1.702
    %v528 = vmul.f32 %v416, 1.702
    %v529 = vmul.f32 %v418, 1.702
    %v530 = vmul.f32 %v237, 1.702
    %v531 = vmul.f32 %v239, 1.702
    %v532 = vmul.f32 %v422, 1.702
    %v533 = vmul.f32 %v424, 1.702
    %v534 = vmul.f32 %v243, 1.702
    %v535 = vmul.f32 %v245, 1.702
    %v536 = vmul.f32 %v428, 1.702
    %v537 = vmul.f32 %v430, 1.702
    %v538 = vmul.f32 %v249, 1.702
    %v539 = vmul.f32 %v251, 1.702
    %v540 = vmul.f32 %v434, 1.702
    %v541 = vmul.f32 %v436, 1.702
    %v542 = vmul.f32 %v255, 1.702
    %v543 = vmul.f32 %v257, 1.702
    %v544 = vmul.f32 %v440, 1.702
    %v545 = vmul.f32 %v442, 1.702
    %v546 = vmul.f32 %v261, 1.702
    %v547 = vmul.f32 %v263, 1.702
    %v548 = vmul.f32 %v446, 1.702
    %v549 = vmul.f32 %v448, 1.702
    %v550 = vmul.f32 %v267, 1.702
    %v551 = vmul.f32 %v269, 1.702
    %v552 = vmul.f32 %v452, 1.702
    %v553 = vmul.f32 %v454, 1.702
    %v554 = vmul.f32 %v273, 1.702
    %v555 = vmul.f32 %v275, 1.702
    %v556 = vmul.f32 %v458, 1.702
    %v557 = vmul.f32 %v460, 1.702
    %v558 = vmul.f32 %v279, 1.702
    %v559 = vmul.f32 %v281, 1.702
    %v560 = vmul.f32 %v464, 1.702
    %v561 = vmul.f32 %v466, 1.702
    %v562 = vmul.f32 %v285, 1.702
    %v563 = vmul.f32 %v287, 1.702
    %v564 = vmul.f32 %v470, 1.702
    %v565 = vmul.f32 %v472, 1.702
    %v566 = vmul.f32 %v291, 1.702
    %v567 = vmul.f32 %v293, 1.702
    %v568 = vmul.f32 %v476, 1.702
    %v569 = vmul.f32 %v478, 1.702
    %v570 = vmul.f32 %v297, 1.702
    %v571 = vmul.f32 %v299, 1.702
    %v572 = vmul.f32 %v482, 1.702
    %v573 = vmul.f32 %v484, 1.702
    %v574 = vmul.f32 %v303, 1.702
    %v575 = vmul.f32 %v305, 1.702
    %v576 = vmul.f32 %v488, 1.702
    %v577 = vmul.f32 %v490, 1.702
    %v578 = vmul.f32 %v309, 1.702
    %v579 = vmul.f32 %v311, 1.702
    %v580 = vmul.f32 %v494, 1.702
    %v581 = vmul.f32 %v496, 1.702
    %v582 = vmul.f32 %v315, 1.702
    %v583 = vmul.f32 %v317, 1.702
    %v584 = vmul.f32 %v500, 1.702
    %v585 = vmul.f32 %v502, 1.702
    %v586 = vmul.f32 %v321, 1.702
    %v587 = vmul.f32 %v323, 1.702
    %v588 = vmul.f32 %v506, 1.702
    %v589 = vmul.f32 %v508, 1.702
    %v590 = vxor.u32 %v510, 2147483648
    %v591 = vxor.u32 %v511, 2147483648
    %v592 = vxor.u32 %v512, 2147483648
    %v593 = vxor.u32 %v513, 2147483648
    %v594 = vxor.u32 %v514, 2147483648
    %v595 = vxor.u32 %v515, 2147483648
    %v596 = vxor.u32 %v516, 2147483648
    %v597 = vxor.u32 %v517, 2147483648
    %v598 = vxor.u32 %v518, 2147483648
    %v599 = vxor.u32 %v519, 2147483648
    %v600 = vxor.u32 %v520, 2147483648
    %v601 = vxor.u32 %v521, 2147483648
    %v602 = vxor.u32 %v522, 2147483648
    %v603 = vxor.u32 %v523, 2147483648
    %v604 = vxor.u32 %v524, 2147483648
    %v605 = vxor.u32 %v525, 2147483648
    %v606 = vxor.u32 %v526, 2147483648
    %v607 = vxor.u32 %v527, 2147483648
    %v608 = vxor.u32 %v528, 2147483648
    %v609 = vxor.u32 %v529, 2147483648
    %v610 = vxor.u32 %v530, 2147483648
    %v611 = vxor.u32 %v531, 2147483648
    %v612 = vxor.u32 %v532, 2147483648
    %v613 = vxor.u32 %v533, 2147483648
    %v614 = vxor.u32 %v534, 2147483648
    %v615 = vxor.u32 %v535, 2147483648
    %v616 = vxor.u32 %v536, 2147483648
    %v617 = vxor.u32 %v537, 2147483648
    %v618 = vxor.u32 %v538, 2147483648
    %v619 = vxor.u32 %v539, 2147483648
    %v620 = vxor.u32 %v540, 2147483648
    %v621 = vxor.u32 %v541, 2147483648
    %v622 = vxor.u32 %v542, 2147483648
    %v623 = vxor.u32 %v543, 2147483648
    %v624 = vxor.u32 %v544, 2147483648
    %v625 = vxor.u32 %v545, 2147483648
    %v626 = vxor.u32 %v546, 2147483648
    %v627 = vxor.u32 %v547, 2147483648
    %v628 = vxor.u32 %v548, 2147483648
    %v629 = vxor.u32 %v549, 2147483648
    %v630 = vxor.u32 %v550, 2147483648
    %v631 = vxor.u32 %v551, 2147483648
    %v632 = vxor.u32 %v552, 2147483648
    %v633 = vxor.u32 %v553, 2147483648
    %v634 = vxor.u32 %v554, 2147483648
    %v635 = vxor.u32 %v555, 2147483648
    %v636 = vxor.u32 %v556, 2147483648
    %v637 = vxor.u32 %v557, 2147483648
    %v638 = vxor.u32 %v558, 2147483648
    %v639 = vxor.u32 %v559, 2147483648
    %v640 = vxor.u32 %v560, 2147483648
    %v641 = vxor.u32 %v561, 2147483648
    %v642 = vxor.u32 %v562, 2147483648
    %v643 = vxor.u32 %v563, 2147483648
    %v644 = vxor.u32 %v564, 2147483648
    %v645 = vxor.u32 %v565, 2147483648
    %v646 = vxor.u32 %v566, 2147483648
    %v647 = vxor.u32 %v567, 2147483648
    %v648 = vxor.u32 %v568, 2147483648
    %v649 = vxor.u32 %v569, 2147483648
    %v650 = vxor.u32 %v570, 2147483648
    %v651 = vxor.u32 %v571, 2147483648
    %v652 = vxor.u32 %v572, 2147483648
    %v653 = vxor.u32 %v573, 2147483648
    %v654 = vxor.u32 %v574, 2147483648
    %v655 = vxor.u32 %v575, 2147483648
    %v656 = vxor.u32 %v576, 2147483648
    %v657 = vxor.u32 %v577, 2147483648
    %v658 = vxor.u32 %v578, 2147483648
    %v659 = vxor.u32 %v579, 2147483648
    %v660 = vxor.u32 %v580, 2147483648
    %v661 = vxor.u32 %v581, 2147483648
    %v662 = vxor.u32 %v582, 2147483648
    %v663 = vxor.u32 %v583, 2147483648
    %v664 = vxor.u32 %v584, 2147483648
    %v665 = vxor.u32 %v585, 2147483648
    %v666 = vxor.u32 %v586, 2147483648
    %v667 = vxor.u32 %v587, 2147483648
    %v668 = vxor.u32 %v588, 2147483648
    %v669 = vxor.u32 %v589, 2147483648
    %v670 = vmul.f32 %v590, 1.442695
    %v671 = vpow.pop %v670
    %v672 = vmul.f32 %v591, 1.442695
    %v673 = vpow.pop %v672
    %v674 = vmul.f32 %v592, 1.442695
    %v675 = vpow.pop %v674
    %v676 = vmul.f32 %v593, 1.442695
    %v677 = vpow.pop %v676
    %v678 = vmul.f32 %v594, 1.442695
    %v679 = vpow.pop %v678
    %v680 = vmul.f32 %v595, 1.442695
    %v681 = vpow.pop %v680
    %v682 = vmul.f32 %v596, 1.442695
    %v683 = vpow.pop %v682
    %v684 = vmul.f32 %v597, 1.442695
    %v685 = vpow.pop %v684
    %v686 = vmul.f32 %v598, 1.442695
    %v687 = vpow.pop %v686
    %v688 = vmul.f32 %v599, 1.442695
    %v689 = vpow.pop %v688
    %v690 = vmul.f32 %v600, 1.442695
    %v691 = vpow.pop %v690
    %v692 = vmul.f32 %v601, 1.442695
    %v693 = vpow.pop %v692
    %v694 = vmul.f32 %v602, 1.442695
    %v695 = vpow.pop %v694
    %v696 = vmul.f32 %v603, 1.442695
    %v697 = vpow.pop %v696
    %v698 = vmul.f32 %v604, 1.442695
    %v699 = vpow.pop %v698
    %v700 = vmul.f32 %v605, 1.442695
    %v701 = vpow.pop %v700
    %v702 = vmul.f32 %v606, 1.442695
    %v703 = vpow.pop %v702
    %v704 = vmul.f32 %v607, 1.442695
    %v705 = vpow.pop %v704
    %v706 = vmul.f32 %v608, 1.442695
    %v707 = vpow.pop %v706
    %v708 = vmul.f32 %v609, 1.442695
    %v709 = vpow.pop %v708
    %v710 = vmul.f32 %v610, 1.442695
    %v711 = vpow.pop %v710
    %v712 = vmul.f32 %v611, 1.442695
    %v713 = vpow.pop %v712
    %v714 = vmul.f32 %v612, 1.442695
    %v715 = vpow.pop %v714
    %v716 = vmul.f32 %v613, 1.442695
    %v717 = vpow.pop %v716
    %v718 = vmul.f32 %v614, 1.442695
    %v719 = vpow.pop %v718
    %v720 = vmul.f32 %v615, 1.442695
    %v721 = vpow.pop %v720
    %v722 = vmul.f32 %v616, 1.442695
    %v723 = vpow.pop %v722
    %v724 = vmul.f32 %v617, 1.442695
    %v725 = vpow.pop %v724
    %v726 = vmul.f32 %v618, 1.442695
    %v727 = vpow.pop %v726
    %v728 = vmul.f32 %v619, 1.442695
    %v729 = vpow.pop %v728
    %v730 = vmul.f32 %v620, 1.442695
    %v731 = vpow.pop %v730
    %v732 = vmul.f32 %v621, 1.442695
    %v733 = vpow.pop %v732
    %v734 = vmul.f32 %v622, 1.442695
    %v735 = vpow.pop %v734
    %v736 = vmul.f32 %v623, 1.442695
    %v737 = vpow.pop %v736
    %v738 = vmul.f32 %v624, 1.442695
    %v739 = vpow.pop %v738
    %v740 = vmul.f32 %v625, 1.442695
    %v741 = vpow.pop %v740
    %v742 = vmul.f32 %v626, 1.442695
    %v743 = vpow.pop %v742
    %v744 = vmul.f32 %v627, 1.442695
    %v745 = vpow.pop %v744
    %v746 = vmul.f32 %v628, 1.442695
    %v747 = vpow.pop %v746
    %v748 = vmul.f32 %v629, 1.442695
    %v749 = vpow.pop %v748
    %v750 = vmul.f32 %v630, 1.442695
    %v751 = vpow.pop %v750
    %v752 = vmul.f32 %v631, 1.442695
    %v753 = vpow.pop %v752
    %v754 = vmul.f32 %v632, 1.442695
    %v755 = vpow.pop %v754
    %v756 = vmul.f32 %v633, 1.442695
    %v757 = vpow.pop %v756
    %v758 = vmul.f32 %v634, 1.442695
    %v759 = vpow.pop %v758
    %v760 = vmul.f32 %v635, 1.442695
    %v761 = vpow.pop %v760
    %v762 = vmul.f32 %v636, 1.442695
    %v763 = vpow.pop %v762
    %v764 = vmul.f32 %v637, 1.442695
    %v765 = vpow.pop %v764
    %v766 = vmul.f32 %v638, 1.442695
    %v767 = vpow.pop %v766
    %v768 = vmul.f32 %v639, 1.442695
    %v769 = vpow.pop %v768
    %v770 = vmul.f32 %v640, 1.442695
    %v771 = vpow.pop %v770
    %v772 = vmul.f32 %v641, 1.442695
    %v773 = vpow.pop %v772
    %v774 = vmul.f32 %v642, 1.442695
    %v775 = vpow.pop %v774
    %v776 = vmul.f32 %v643, 1.442695
    %v777 = vpow.pop %v776
    %v778 = vmul.f32 %v644, 1.442695
    %v779 = vpow.pop %v778
    %v780 = vmul.f32 %v645, 1.442695
    %v781 = vpow.pop %v780
    %v782 = vmul.f32 %v646, 1.442695
    %v783 = vpow.pop %v782
    %v784 = vmul.f32 %v647, 1.442695
    %v785 = vpow.pop %v784
    %v786 = vmul.f32 %v648, 1.442695
    %v787 = vpow.pop %v786
    %v788 = vmul.f32 %v649, 1.442695
    %v789 = vpow.pop %v788
    %v790 = vmul.f32 %v650, 1.442695
    %v791 = vpow.pop %v790
    %v792 = vmul.f32 %v651, 1.442695
    %v793 = vpow.pop %v792
    %v794 = vmul.f32 %v652, 1.442695
    %v795 = vpow.pop %v794
    %v796 = vmul.f32 %v653, 1.442695
    %v797 = vpow.pop %v796
    %v798 = vmul.f32 %v654, 1.442695
    %v799 = vpow.pop %v798
    %v800 = vmul.f32 %v655, 1.442695
    %v801 = vpow.pop %v800
    %v802 = vmul.f32 %v656, 1.442695
    %v803 = vpow.pop %v802
    %v804 = vmul.f32 %v657, 1.442695
    %v805 = vpow.pop %v804
    %v806 = vmul.f32 %v658, 1.442695
    %v807 = vpow.pop %v806
    %v808 = vmul.f32 %v659, 1.442695
    %v809 = vpow.pop %v808
    %v810 = vmul.f32 %v660, 1.442695
    %v811 = vpow.pop %v810
    %v812 = vmul.f32 %v661, 1.442695
    %v813 = vpow.pop %v812
    %v814 = vmul.f32 %v662, 1.442695
    %v815 = vpow.pop %v814
    %v816 = vmul.f32 %v663, 1.442695
    %v817 = vpow.pop %v816
    %v818 = vmul.f32 %v664, 1.442695
    %v819 = vpow.pop %v818
    %v820 = vmul.f32 %v665, 1.442695
    %v821 = vpow.pop %v820
    %v822 = vmul.f32 %v666, 1.442695
    %v823 = vpow.pop %v822
    %v824 = vmul.f32 %v667, 1.442695
    %v825 = vpow.pop %v824
    %v826 = vmul.f32 %v668, 1.442695
    %v827 = vpow.pop %v826
    %v828 = vmul.f32 %v669, 1.442695
    %v829 = vpow.pop %v828
    %v830 = vadd.f32 %v671, 1.0
    %v831 = vadd.f32 %v673, 1.0
    %v832 = vadd.f32 %v675, 1.0
    %v833 = vadd.f32 %v677, 1.0
    %v834 = vadd.f32 %v679, 1.0
    %v835 = vadd.f32 %v681, 1.0
    %v836 = vadd.f32 %v683, 1.0
    %v837 = vadd.f32 %v685, 1.0
    %v838 = vadd.f32 %v687, 1.0
    %v839 = vadd.f32 %v689, 1.0
    %v840 = vadd.f32 %v691, 1.0
    %v841 = vadd.f32 %v693, 1.0
    %v842 = vadd.f32 %v695, 1.0
    %v843 = vadd.f32 %v697, 1.0
    %v844 = vadd.f32 %v699, 1.0
    %v845 = vadd.f32 %v701, 1.0
    %v846 = vadd.f32 %v703, 1.0
    %v847 = vadd.f32 %v705, 1.0
    %v848 = vadd.f32 %v707, 1.0
    %v849 = vadd.f32 %v709, 1.0
    %v850 = vadd.f32 %v711, 1.0
    %v851 = vadd.f32 %v713, 1.0
    %v852 = vadd.f32 %v715, 1.0
    %v853 = vadd.f32 %v717, 1.0
    %v854 = vadd.f32 %v719, 1.0
    %v855 = vadd.f32 %v721, 1.0
    %v856 = vadd.f32 %v723, 1.0
    %v857 = vadd.f32 %v725, 1.0
    %v858 = vadd.f32 %v727, 1.0
    %v859 = vadd.f32 %v729, 1.0
    %v860 = vadd.f32 %v731, 1.0
    %v861 = vadd.f32 %v733, 1.0
    %v862 = vadd.f32 %v735, 1.0
    %v863 = vadd.f32 %v737, 1.0
    %v864 = vadd.f32 %v739, 1.0
    %v865 = vadd.f32 %v741, 1.0
    %v866 = vadd.f32 %v743, 1.0
    %v867 = vadd.f32 %v745, 1.0
    %v868 = vadd.f32 %v747, 1.0
    %v869 = vadd.f32 %v749, 1.0
    %v870 = vadd.f32 %v751, 1.0
    %v871 = vadd.f32 %v753, 1.0
    %v872 = vadd.f32 %v755, 1.0
    %v873 = vadd.f32 %v757, 1.0
    %v874 = vadd.f32 %v759, 1.0
    %v875 = vadd.f32 %v761, 1.0
    %v876 = vadd.f32 %v763, 1.0
    %v877 = vadd.f32 %v765, 1.0
    %v878 = vadd.f32 %v767, 1.0
    %v879 = vadd.f32 %v769, 1.0
    %v880 = vadd.f32 %v771, 1.0
    %v881 = vadd.f32 %v773, 1.0
    %v882 = vadd.f32 %v775, 1.0
    %v883 = vadd.f32 %v777, 1.0
    %v884 = vadd.f32 %v779, 1.0
    %v885 = vadd.f32 %v781, 1.0
    %v886 = vadd.f32 %v783, 1.0
    %v887 = vadd.f32 %v785, 1.0
    %v888 = vadd.f32 %v787, 1.0
    %v889 = vadd.f32 %v789, 1.0
    %v890 = vadd.f32 %v791, 1.0
    %v891 = vadd.f32 %v793, 1.0
    %v892 = vadd.f32 %v795, 1.0
    %v893 = vadd.f32 %v797, 1.0
    %v894 = vadd.f32 %v799, 1.0
    %v895 = vadd.f32 %v801, 1.0
    %v896 = vadd.f32 %v803, 1.0
    %v897 = vadd.f32 %v805, 1.0
    %v898 = vadd.f32 %v807, 1.0
    %v899 = vadd.f32 %v809, 1.0
    %v900 = vadd.f32 %v811, 1.0
    %v901 = vadd.f32 %v813, 1.0
    %v902 = vadd.f32 %v815, 1.0
    %v903 = vadd.f32 %v817, 1.0
    %v904 = vadd.f32 %v819, 1.0
    %v905 = vadd.f32 %v821, 1.0
    %v906 = vadd.f32 %v823, 1.0
    %v907 = vadd.f32 %v825, 1.0
    %v908 = vadd.f32 %v827, 1.0
    %v909 = vadd.f32 %v829, 1.0
    %v910 = vrcp.pop %v830
    %v911 = vmul.f32 1.0, %v910
    %v912 = vrcp.pop %v831
    %v913 = vmul.f32 1.0, %v912
    %v914 = vrcp.pop %v832
    %v915 = vmul.f32 1.0, %v914
    %v916 = vrcp.pop %v833
    %v917 = vmul.f32 1.0, %v916
    %v918 = vrcp.pop %v834
    %v919 = vmul.f32 1.0, %v918
    %v920 = vrcp.pop %v835
    %v921 = vmul.f32 1.0, %v920
    %v922 = vrcp.pop %v836
    %v923 = vmul.f32 1.0, %v922
    %v924 = vrcp.pop %v837
    %v925 = vmul.f32 1.0, %v924
    %v926 = vrcp.pop %v838
    %v927 = vmul.f32 1.0, %v926
    %v928 = vrcp.pop %v839
    %v929 = vmul.f32 1.0, %v928
    %v930 = vrcp.pop %v840
    %v931 = vmul.f32 1.0, %v930
    %v932 = vrcp.pop %v841
    %v933 = vmul.f32 1.0, %v932
    %v934 = vrcp.pop %v842
    %v935 = vmul.f32 1.0, %v934
    %v936 = vrcp.pop %v843
    %v937 = vmul.f32 1.0, %v936
    %v938 = vrcp.pop %v844
    %v939 = vmul.f32 1.0, %v938
    %v940 = vrcp.pop %v845
    %v941 = vmul.f32 1.0, %v940
    %v942 = vrcp.pop %v846
    %v943 = vmul.f32 1.0, %v942
    %v944 = vrcp.pop %v847
    %v945 = vmul.f32 1.0, %v944
    %v946 = vrcp.pop %v848
    %v947 = vmul.f32 1.0, %v946
    %v948 = vrcp.pop %v849
    %v949 = vmul.f32 1.0, %v948
    %v950 = vrcp.pop %v850
    %v951 = vmul.f32 1.0, %v950
    %v952 = vrcp.pop %v851
    %v953 = vmul.f32 1.0, %v952
    %v954 = vrcp.pop %v852
    %v955 = vmul.f32 1.0, %v954
    %v956 = vrcp.pop %v853
    %v957 = vmul.f32 1.0, %v956
    %v958 = vrcp.pop %v854
    %v959 = vmul.f32 1.0, %v958
    %v960 = vrcp.pop %v855
    %v961 = vmul.f32 1.0, %v960
    %v962 = vrcp.pop %v856
    %v963 = vmul.f32 1.0, %v962
    %v964 = vrcp.pop %v857
    %v965 = vmul.f32 1.0, %v964
    %v966 = vrcp.pop %v858
    %v967 = vmul.f32 1.0, %v966
    %v968 = vrcp.pop %v859
    %v969 = vmul.f32 1.0, %v968
    %v970 = vrcp.pop %v860
    %v971 = vmul.f32 1.0, %v970
    %v972 = vrcp.pop %v861
    %v973 = vmul.f32 1.0, %v972
    %v974 = vrcp.pop %v862
    %v975 = vmul.f32 1.0, %v974
    %v976 = vrcp.pop %v863
    %v977 = vmul.f32 1.0, %v976
    %v978 = vrcp.pop %v864
    %v979 = vmul.f32 1.0, %v978
    %v980 = vrcp.pop %v865
    %v981 = vmul.f32 1.0, %v980
    %v982 = vrcp.pop %v866
    %v983 = vmul.f32 1.0, %v982
    %v984 = vrcp.pop %v867
    %v985 = vmul.f32 1.0, %v984
    %v986 = vrcp.pop %v868
    %v987 = vmul.f32 1.0, %v986
    %v988 = vrcp.pop %v869
    %v989 = vmul.f32 1.0, %v988
    %v990 = vrcp.pop %v870
    %v991 = vmul.f32 1.0, %v990
    %v992 = vrcp.pop %v871
    %v993 = vmul.f32 1.0, %v992
    %v994 = vrcp.pop %v872
    %v995 = vmul.f32 1.0, %v994
    %v996 = vrcp.pop %v873
    %v997 = vmul.f32 1.0, %v996
    %v998 = vrcp.pop %v874
    %v999 = vmul.f32 1.0, %v998
    %v1000 = vrcp.pop %v875
    %v1001 = vmul.f32 1.0, %v1000
    %v1002 = vrcp.pop %v876
    %v1003 = vmul.f32 1.0, %v1002
    %v1004 = vrcp.pop %v877
    %v1005 = vmul.f32 1.0, %v1004
    %v1006 = vrcp.pop %v878
    %v1007 = vmul.f32 1.0, %v1006
    %v1008 = vrcp.pop %v879
    %v1009 = vmul.f32 1.0, %v1008
    %v1010 = vrcp.pop %v880
    %v1011 = vmul.f32 1.0, %v1010
    %v1012 = vrcp.pop %v881
    %v1013 = vmul.f32 1.0, %v1012
    %v1014 = vrcp.pop %v882
    %v1015 = vmul.f32 1.0, %v1014
    %v1016 = vrcp.pop %v883
    %v1017 = vmul.f32 1.0, %v1016
    %v1018 = vrcp.pop %v884
    %v1019 = vmul.f32 1.0, %v1018
    %v1020 = vrcp.pop %v885
    %v1021 = vmul.f32 1.0, %v1020
    %v1022 = vrcp.pop %v886
    %v1023 = vmul.f32 1.0, %v1022
    %v1024 = vrcp.pop %v887
    %v1025 = vmul.f32 1.0, %v1024
    %v1026 = vrcp.pop %v888
    %v1027 = vmul.f32 1.0, %v1026
    %v1028 = vrcp.pop %v889
    %v1029 = vmul.f32 1.0, %v1028
    %v1030 = vrcp.pop %v890
    %v1031 = vmul.f32 1.0, %v1030
    %v1032 = vrcp.pop %v891
    %v1033 = vmul.f32 1.0, %v1032
    %v1034 = vrcp.pop %v892
    %v1035 = vmul.f32 1.0, %v1034
    %v1036 = vrcp.pop %v893
    %v1037 = vmul.f32 1.0, %v1036
    %v1038 = vrcp.pop %v894
    %v1039 = vmul.f32 1.0, %v1038
    %v1040 = vrcp.pop %v895
    %v1041 = vmul.f32 1.0, %v1040
    %v1042 = vrcp.pop %v896
    %v1043 = vmul.f32 1.0, %v1042
    %v1044 = vrcp.pop %v897
    %v1045 = vmul.f32 1.0, %v1044
    %v1046 = vrcp.pop %v898
    %v1047 = vmul.f32 1.0, %v1046
    %v1048 = vrcp.pop %v899
    %v1049 = vmul.f32 1.0, %v1048
    %v1050 = vrcp.pop %v900
    %v1051 = vmul.f32 1.0, %v1050
    %v1052 = vrcp.pop %v901
    %v1053 = vmul.f32 1.0, %v1052
    %v1054 = vrcp.pop %v902
    %v1055 = vmul.f32 1.0, %v1054
    %v1056 = vrcp.pop %v903
    %v1057 = vmul.f32 1.0, %v1056
    %v1058 = vrcp.pop %v904
    %v1059 = vmul.f32 1.0, %v1058
    %v1060 = vrcp.pop %v905
    %v1061 = vmul.f32 1.0, %v1060
    %v1062 = vrcp.pop %v906
    %v1063 = vmul.f32 1.0, %v1062
    %v1064 = vrcp.pop %v907
    %v1065 = vmul.f32 1.0, %v1064
    %v1066 = vrcp.pop %v908
    %v1067 = vmul.f32 1.0, %v1066
    %v1068 = vrcp.pop %v909
    %v1069 = vmul.f32 1.0, %v1068
    %v1070 = vmul.f32 %v207, %v911
    %v1071 = vmul.f32 %v209, %v913
    %v1072 = vmul.f32 %v392, %v915
    %v1073 = vmul.f32 %v394, %v917
    %v1074 = vmul.f32 %v213, %v919
    %v1075 = vmul.f32 %v215, %v921
    %v1076 = vmul.f32 %v398, %v923
    %v1077 = vmul.f32 %v400, %v925
    %v1078 = vmul.f32 %v219, %v927
    %v1079 = vmul.f32 %v221, %v929
    %v1080 = vmul.f32 %v404, %v931
    %v1081 = vmul.f32 %v406, %v933
    %v1082 = vmul.f32 %v225, %v935
    %v1083 = vmul.f32 %v227, %v937
    %v1084 = vmul.f32 %v410, %v939
    %v1085 = vmul.f32 %v412, %v941
    %v1086 = vmul.f32 %v231, %v943
    %v1087 = vmul.f32 %v233, %v945
    %v1088 = vmul.f32 %v416, %v947
    %v1089 = vmul.f32 %v418, %v949
    %v1090 = vmul.f32 %v237, %v951
    %v1091 = vmul.f32 %v239, %v953
    %v1092 = vmul.f32 %v422, %v955
    %v1093 = vmul.f32 %v424, %v957
    %v1094 = vmul.f32 %v243, %v959
    %v1095 = vmul.f32 %v245, %v961
    %v1096 = vmul.f32 %v428, %v963
    %v1097 = vmul.f32 %v430, %v965
    %v1098 = vmul.f32 %v249, %v967
    %v1099 = vmul.f32 %v251, %v969
    %v1100 = vmul.f32 %v434, %v971
    %v1101 = vmul.f32 %v436, %v973
    %v1102 = vmul.f32 %v255, %v975
    %v1103 = vmul.f32 %v257, %v977
    %v1104 = vmul.f32 %v440, %v979
    %v1105 = vmul.f32 %v442, %v981
    %v1106 = vmul.f32 %v261, %v983
    %v1107 = vmul.f32 %v263, %v985
    %v1108 = vmul.f32 %v446, %v987
    %v1109 = vmul.f32 %v448, %v989
    %v1110 = vmul.f32 %v267, %v991
    %v1111 = vmul.f32 %v269, %v993
    %v1112 = vmul.f32 %v452, %v995
    %v1113 = vmul.f32 %v454, %v997
    %v1114 = vmul.f32 %v273, %v999
    %v1115 = vmul.f32 %v275, %v1001
    %v1116 = vmul.f32 %v458, %v1003
    %v1117 = vmul.f32 %v460, %v1005
    %v1118 = vmul.f32 %v279, %v1007
    %v1119 = vmul.f32 %v281, %v1009
    %v1120 = vmul.f32 %v464, %v1011
    %v1121 = vmul.f32 %v466, %v1013
    %v1122 = vmul.f32 %v285, %v1015
    %v1123 = vmul.f32 %v287, %v1017
    %v1124 = vmul.f32 %v470, %v1019
    %v1125 = vmul.f32 %v472, %v1021
    %v1126 = vmul.f32 %v291, %v1023
    %v1127 = vmul.f32 %v293, %v1025
    %v1128 = vmul.f32 %v476, %v1027
    %v1129 = vmul.f32 %v478, %v1029
    %v1130 = vmul.f32 %v297, %v1031
    %v1131 = vmul.f32 %v299, %v1033
    %v1132 = vmul.f32 %v482, %v1035
    %v1133 = vmul.f32 %v484, %v1037
    %v1134 = vmul.f32 %v303, %v1039
    %v1135 = vmul.f32 %v305, %v1041
    %v1136 = vmul.f32 %v488, %v1043
    %v1137 = vmul.f32 %v490, %v1045
    %v1138 = vmul.f32 %v309, %v1047
    %v1139 = vmul.f32 %v311, %v1049
    %v1140 = vmul.f32 %v494, %v1051
    %v1141 = vmul.f32 %v496, %v1053
    %v1142 = vmul.f32 %v315, %v1055
    %v1143 = vmul.f32 %v317, %v1057
    %v1144 = vmul.f32 %v500, %v1059
    %v1145 = vmul.f32 %v502, %v1061
    %v1146 = vmul.f32 %v321, %v1063
    %v1147 = vmul.f32 %v323, %v1065
    %v1148 = vmul.f32 %v506, %v1067
    %v1149 = vmul.f32 %v508, %v1069
    %v1150 = vld [vmem:[#allocation2] sm:$0xff]
    %v1151 = vld [vmem:[#allocation2 + $0x8] sm:$0xff]
    %v1152 = vld [vmem:[#allocation2 + $0x10] sm:$0xff]
    %v1153 = vld [vmem:[#allocation2 + $0x18] sm:$0xff]
    %v1154 = vld [vmem:[#allocation2 + $0x20] sm:$0xff]
    %v1155 = vld [vmem:[#allocation2 + $0x28] sm:$0xff]
    %v1156 = vld [vmem:[#allocation2 + $0x30] sm:$0xff]
    %v1157 = vld [vmem:[#allocation2 + $0x38] sm:$0xff]
    %v1158 = vld [vmem:[#allocation2 + $0x40] sm:$0xff]
    %v1159 = vld [vmem:[#allocation2 + $0x48] sm:$0xff]
    %v1160 = vld [vmem:[#allocation2 + $0x50] sm:$0xff]
    %v1161 = vld [vmem:[#allocation2 + $0x58] sm:$0xff]
    %v1162 = vld [vmem:[#allocation2 + $0x60] sm:$0xff]
    %v1163 = vld [vmem:[#allocation2 + $0x68] sm:$0xff]
    %v1164 = vld [vmem:[#allocation2 + $0x70] sm:$0xff]
    %v1165 = vld [vmem:[#allocation2 + $0x78] sm:$0xff]
    %v1166 = vld [vmem:[#allocation2 + $0x80] sm:$0xff]
    %v1167 = vld [vmem:[#allocation2 + $0x88] sm:$0xff]
    %v1168 = vld [vmem:[#allocation2 + $0x90] sm:$0xff]
    %v1169 = vld [vmem:[#allocation2 + $0x98] sm:$0xff]
    %v1170 = vld [vmem:[#allocation2 + $0xa0] sm:$0xff]
    %v1171 = vld [vmem:[#allocation2 + $0xa8] sm:$0xff]
    %v1172 = vld [vmem:[#allocation2 + $0xb0] sm:$0xff]
    %v1173 = vld [vmem:[#allocation2 + $0xb8] sm:$0xff]
    %v1174 = vld [vmem:[#allocation2 + $0xc0] sm:$0xff]
    %v1175 = vld [vmem:[#allocation2 + $0xc8] sm:$0xff]
    %v1176 = vld [vmem:[#allocation2 + $0xd0] sm:$0xff]
    %v1177 = vld [vmem:[#allocation2 + $0xd8] sm:$0xff]
    %v1178 = vld [vmem:[#allocation2 + $0xe0] sm:$0xff]
    %v1179 = vld [vmem:[#allocation2 + $0xe8] sm:$0xff]
    %v1180 = vld [vmem:[#allocation2 + $0xf0] sm:$0xff]
    %v1181 = vld [vmem:[#allocation2 + $0xf8] sm:$0xff]
    %v1182 = vld [vmem:[#allocation2 + $0x100] sm:$0xff]
    %v1183 = vld [vmem:[#allocation2 + $0x108] sm:$0xff]
    %v1184 = vld [vmem:[#allocation2 + $0x110] sm:$0xff]
    %v1185 = vld [vmem:[#allocation2 + $0x118] sm:$0xff]
    %v1186 = vld [vmem:[#allocation2 + $0x120] sm:$0xff]
    %v1187 = vld [vmem:[#allocation2 + $0x128] sm:$0xff]
    %v1188 = vld [vmem:[#allocation2 + $0x130] sm:$0xff]
    %v1189 = vld [vmem:[#allocation2 + $0x138] sm:$0xff]
    %v1190 = vld [vmem:[#allocation2 + $0x140] sm:$0xff]
    %v1191 = vld [vmem:[#allocation2 + $0x148] sm:$0xff]
    %v1192 = vld [vmem:[#allocation2 + $0x150] sm:$0xff]
    %v1193 = vld [vmem:[#allocation2 + $0x158] sm:$0xff]
    %v1194 = vld [vmem:[#allocation2 + $0x160] sm:$0xff]
    %v1195 = vld [vmem:[#allocation2 + $0x168] sm:$0xff]
    %v1196 = vld [vmem:[#allocation2 + $0x170] sm:$0xff]
    %v1197 = vld [vmem:[#allocation2 + $0x178] sm:$0xff]
    %v1198 = vld [vmem:[#allocation2 + $0x180] sm:$0xff]
    %v1199 = vld [vmem:[#allocation2 + $0x188] sm:$0xff]
    %v1200 = vld [vmem:[#allocation2 + $0x190] sm:$0xff]
    %v1201 = vld [vmem:[#allocation2 + $0x198] sm:$0xff]
    %v1202 = vld [vmem:[#allocation2 + $0x1a0] sm:$0xff]
    %v1203 = vld [vmem:[#allocation2 + $0x1a8] sm:$0xff]
    %v1204 = vld [vmem:[#allocation2 + $0x1b0] sm:$0xff]
    %v1205 = vld [vmem:[#allocation2 + $0x1b8] sm:$0xff]
    %v1206 = vld [vmem:[#allocation2 + $0x1c0] sm:$0xff]
    %v1207 = vld [vmem:[#allocation2 + $0x1c8] sm:$0xff]
    %v1208 = vld [vmem:[#allocation2 + $0x1d0] sm:$0xff]
    %v1209 = vld [vmem:[#allocation2 + $0x1d8] sm:$0xff]
    %v1210 = vld [vmem:[#allocation2 + $0x1e0] sm:$0xff]
    %v1211 = vld [vmem:[#allocation2 + $0x1e8] sm:$0xff]
    %v1212 = vld [vmem:[#allocation2 + $0x1f0] sm:$0xff]
    %v1213 = vld [vmem:[#allocation2 + $0x1f8] sm:$0xff]
    %v1214 = vld [vmem:[%s4] sm:$0x1]
    %v1216 = vlaneseq
    %v1217 = vshrl.u32 %v1216, 7
    %v1218 = vsub.s32 0, %v1217
    %v1219 = vrot.slane %v1214, %v1218
    %1221 = vmatprep.subr.mxu0 0.0
    %1222 = vmatpush1.msra.mxu0 %v1150
    %1223 = vmatprep.subr.mxu0 0.0
    %1224 = vmatpush1.msra.mxu0 %v1151
    %1225 = vmatprep.subr.mxu0 0.0
    %1226 = vmatpush1.msra.mxu0 %v1152
    %1227 = vmatprep.subr.mxu0 0.0
    %1228 = vmatpush1.msra.mxu0 %v1153
    %1229 = vmatprep.subr.mxu0 0.0
    %1230 = vmatpush1.msra.mxu0 %v1154
    %1231 = vmatprep.subr.mxu0 0.0
    %1232 = vmatpush1.msra.mxu0 %v1155
    %1233 = vmatprep.subr.mxu0 0.0
    %1234 = vmatpush1.msra.mxu0 %v1156
    %1235 = vmatprep.subr.mxu0 0.0
    %1236 = vmatpush1.msra.mxu0 %v1157
    %1237 = vmatprep.subr.mxu0 0.0
    %1238 = vmatpush1.msra.mxu0 %v1158
    %1239 = vmatprep.subr.mxu0 0.0
    %1240 = vmatpush1.msra.mxu0 %v1159
    %1241 = vmatprep.subr.mxu0 0.0
    %1242 = vmatpush1.msra.mxu0 %v1160
    %1243 = vmatprep.subr.mxu0 0.0
    %1244 = vmatpush1.msra.mxu0 %v1161
    %1245 = vmatprep.subr.mxu0 0.0
    %1246 = vmatpush1.msra.mxu0 %v1162
    %1247 = vmatprep.subr.mxu0 0.0
    %1248 = vmatpush1.msra.mxu0 %v1163
    %1249 = vmatprep.subr.mxu0 0.0
    %1250 = vmatpush1.msra.mxu0 %v1164
    %1251 = vmatprep.subr.mxu0 0.0
    %1252 = vmatpush1.msra.mxu0 %v1165
    %1253 = vmatprep.subr.mxu0 0.0
    %1254 = vmatpush1.msra.mxu0 %v1166
    %1255 = vmatprep.subr.mxu0 0.0
    %1256 = vmatpush1.msra.mxu0 %v1167
    %1257 = vmatprep.subr.mxu0 0.0
    %1258 = vmatpush1.msra.mxu0 %v1168
    %1259 = vmatprep.subr.mxu0 0.0
    %1260 = vmatpush1.msra.mxu0 %v1169
    %1261 = vmatprep.subr.mxu0 0.0
    %1262 = vmatpush1.msra.mxu0 %v1170
    %1263 = vmatprep.subr.mxu0 0.0
    %1264 = vmatpush1.msra.mxu0 %v1171
    %1265 = vmatprep.subr.mxu0 0.0
    %1266 = vmatpush1.msra.mxu0 %v1172
    %1267 = vmatprep.subr.mxu0 0.0
    %1268 = vmatpush1.msra.mxu0 %v1173
    %1269 = vmatprep.subr.mxu0 0.0
    %1270 = vmatpush1.msra.mxu0 %v1174
    %1271 = vmatprep.subr.mxu0 0.0
    %1272 = vmatpush1.msra.mxu0 %v1175
    %1273 = vmatprep.subr.mxu0 0.0
    %1274 = vmatpush1.msra.mxu0 %v1176
    %1275 = vmatprep.subr.mxu0 0.0
    %1276 = vmatpush1.msra.mxu0 %v1177
    %1277 = vmatprep.subr.mxu0 0.0
    %1278 = vmatpush1.msra.mxu0 %v1178
    %1279 = vmatprep.subr.mxu0 0.0
    %1280 = vmatpush1.msra.mxu0 %v1179
    %1281 = vmatprep.subr.mxu0 0.0
    %1282 = vmatpush1.msra.mxu0 %v1180
    %1283 = vmatprep.subr.mxu0 0.0
    %1284 = vmatpush1.msra.mxu0 %v1181
    %1285 = vmatprep.mubr.f32.mxu0 %v1071
    %1286 = vmatmul.mubr.f32.gmra.mrb[0].mxu0 %v1070
    %v1287 = vpop.f32.mrb[0].mxu0
    %v1288 = vadd.f32 %v1219, %v1287
    %v1289 = vpop.f32.mrb[0].mxu0
    %1290 = vmatprep.mubr.f32.mxu0 %v1075
    %1291 = vmatmul.mubr.f32.gmra.mrb[0].mxu0 %v1074
    %v1292 = vpop.f32.mrb[0].mxu0
    %v1293 = vadd.f32 %v1219, %v1292
    %v1294 = vpop.f32.mrb[0].mxu0
    %1295 = vmatprep.mubr.f32.mxu0 %v1079
    %1296 = vmatmul.mubr.f32.gmra.mrb[0].mxu0 %v1078
    %v1297 = vpop.f32.mrb[0].mxu0
    %v1298 = vadd.f32 %v1219, %v1297
    %v1299 = vpop.f32.mrb[0].mxu0
    %1300 = vmatprep.mubr.f32.mxu0 %v1083
    %1301 = vmatmul.mubr.f32.gmra.mrb[0].mxu0 %v1082
    %v1302 = vpop.f32.mrb[0].mxu0
    %v1303 = vadd.f32 %v1219, %v1302
    %v1304 = vpop.f32.mrb[0].mxu0
    %1305 = vmatprep.mubr.f32.mxu0 %v1087
    %1306 = vmatmul.mubr.f32.gmra.mrb[0].mxu0 %v1086
    %v1307 = vpop.f32.mrb[0].mxu0
    %v1308 = vadd.f32 %v1219, %v1307
    %v1309 = vpop.f32.mrb[0].mxu0
    %1310 = vmatprep.mubr.f32.mxu0 %v1091
    %1311 = vmatmul.mubr.f32.gmra.mrb[0].mxu0 %v1090
    %v1312 = vpop.f32.mrb[0].mxu0
    %v1313 = vadd.f32 %v1219, %v1312
    %v1314 = vpop.f32.mrb[0].mxu0
    %1315 = vmatprep.mubr.f32.mxu0 %v1095
    %1316 = vmatmul.mubr.f32.gmra.mrb[0].mxu0 %v1094
    %v1317 = vpop.f32.mrb[0].mxu0
    %v1318 = vadd.f32 %v1219, %v1317
    %v1319 = vpop.f32.mrb[0].mxu0
    %1320 = vmatprep.mubr.f32.mxu0 %v1099
    %1321 = vmatmul.mubr.f32.gmra.mrb[0].mxu0 %v1098
    %v1322 = vpop.f32.mrb[0].mxu0
    %v1323 = vadd.f32 %v1219, %v1322
    %v1324 = vpop.f32.mrb[0].mxu0
    %1325 = vmatprep.mubr.f32.mxu0 %v1103
    %1326 = vmatmul.mubr.f32.gmra.mrb[0].mxu0 %v1102
    %v1327 = vpop.f32.mrb[0].mxu0
    %v1328 = vadd.f32 %v1219, %v1327
    %v1329 = vpop.f32.mrb[0].mxu0
    %1330 = vmatprep.mubr.f32.mxu0 %v1107
    %1331 = vmatmul.mubr.f32.gmra.mrb[0].mxu0 %v1106
    %v1332 = vpop.f32.mrb[0].mxu0
    %v1333 = vadd.f32 %v1219, %v1332
    %v1334 = vpop.f32.mrb[0].mxu0
    %1335 = vmatprep.mubr.f32.mxu0 %v1111
    %1336 = vmatmul.mubr.f32.gmra.mrb[0].mxu0 %v1110
    %v1337 = vpop.f32.mrb[0].mxu0
    %v1338 = vadd.f32 %v1219, %v1337
    %v1339 = vpop.f32.mrb[0].mxu0
    %1340 = vmatprep.mubr.f32.mxu0 %v1115
    %1341 = vmatmul.mubr.f32.gmra.mrb[0].mxu0 %v1114
    %v1342 = vpop.f32.mrb[0].mxu0
    %v1343 = vadd.f32 %v1219, %v1342
    %v1344 = vpop.f32.mrb[0].mxu0
    %1345 = vmatprep.mubr.f32.mxu0 %v1119
    %1346 = vmatmul.mubr.f32.gmra.mrb[0].mxu0 %v1118
    %v1347 = vpop.f32.mrb[0].mxu0
    %v1348 = vadd.f32 %v1219, %v1347
    %v1349 = vpop.f32.mrb[0].mxu0
    %1350 = vmatprep.mubr.f32.mxu0 %v1123
    %1351 = vmatmul.mubr.f32.gmra.mrb[0].mxu0 %v1122
    %v1352 = vpop.f32.mrb[0].mxu0
    %v1353 = vadd.f32 %v1219, %v1352
    %v1354 = vpop.f32.mrb[0].mxu0
    %1355 = vmatprep.mubr.f32.mxu0 %v1127
    %1356 = vmatmul.mubr.f32.gmra.mrb[0].mxu0 %v1126
    %v1357 = vpop.f32.mrb[0].mxu0
    %v1358 = vadd.f32 %v1219, %v1357
    %v1359 = vpop.f32.mrb[0].mxu0
    %1360 = vmatprep.mubr.f32.mxu0 %v1131
    %1361 = vmatmul.mubr.f32.gmra.mrb[0].mxu0 %v1130
    %v1362 = vpop.f32.mrb[0].mxu0
    %v1363 = vadd.f32 %v1219, %v1362
    %v1364 = vpop.f32.mrb[0].mxu0
    %1365 = vmatprep.mubr.f32.mxu0 %v1135
    %1366 = vmatmul.mubr.f32.gmra.mrb[0].mxu0 %v1134
    %v1367 = vpop.f32.mrb[0].mxu0
    %v1368 = vadd.f32 %v1219, %v1367
    %v1369 = vpop.f32.mrb[0].mxu0
    %1370 = vmatprep.mubr.f32.mxu0 %v1139
    %1371 = vmatmul.mubr.f32.gmra.mrb[0].mxu0 %v1138
    %v1372 = vpop.f32.mrb[0].mxu0
    %v1373 = vadd.f32 %v1219, %v1372
    %v1374 = vpop.f32.mrb[0].mxu0
    %1375 = vmatprep.mubr.f32.mxu0 %v1143
    %1376 = vmatmul.mubr.f32.gmra.mrb[0].mxu0 %v1142
    %v1377 = vpop.f32.mrb[0].mxu0
    %v1378 = vadd.f32 %v1219, %v1377
    %v1379 = vpop.f32.mrb[0].mxu0
    %1380 = vmatprep.mubr.f32.mxu0 %v1147
    %1381 = vmatmul.mubr.f32.gmra.mrb[0].mxu0 %v1146
    %v1382 = vpop.f32.mrb[0].mxu0
    %v1383 = vadd.f32 %v1219, %v1382
    %v1384 = vpop.f32.mrb[0].mxu0
    %1385 = vdwg.mxu0
    %1386 = vmatprep.subr.mxu0 0.0
    %1387 = vmatpush1.msra.mxu0 %v1182
    %1388 = vmatprep.subr.mxu0 0.0
    %1389 = vmatpush1.msra.mxu0 %v1183
    %1390 = vmatprep.subr.mxu0 0.0
    %1391 = vmatpush1.msra.mxu0 %v1184
    %1392 = vmatprep.subr.mxu0 0.0
    %1393 = vmatpush1.msra.mxu0 %v1185
    %1394 = vmatprep.subr.mxu0 0.0
    %1395 = vmatpush1.msra.mxu0 %v1186
    %1396 = vmatprep.subr.mxu0 0.0
    %1397 = vmatpush1.msra.mxu0 %v1187
    %1398 = vmatprep.subr.mxu0 0.0
    %1399 = vmatpush1.msra.mxu0 %v1188
    %1400 = vmatprep.subr.mxu0 0.0
    %1401 = vmatpush1.msra.mxu0 %v1189
    %1402 = vmatprep.subr.mxu0 0.0
    %1403 = vmatpush1.msra.mxu0 %v1190
    %1404 = vmatprep.subr.mxu0 0.0
    %1405 = vmatpush1.msra.mxu0 %v1191
    %1406 = vmatprep.subr.mxu0 0.0
    %1407 = vmatpush1.msra.mxu0 %v1192
    %1408 = vmatprep.subr.mxu0 0.0
    %1409 = vmatpush1.msra.mxu0 %v1193
    %1410 = vmatprep.subr.mxu0 0.0
    %1411 = vmatpush1.msra.mxu0 %v1194
    %1412 = vmatprep.subr.mxu0 0.0
    %1413 = vmatpush1.msra.mxu0 %v1195
    %1414 = vmatprep.subr.mxu0 0.0
    %1415 = vmatpush1.msra.mxu0 %v1196
    %1416 = vmatprep.subr.mxu0 0.0
    %1417 = vmatpush1.msra.mxu0 %v1197
    %1418 = vmatprep.subr.mxu0 0.0
    %1419 = vmatpush1.msra.mxu0 %v1198
    %1420 = vmatprep.subr.mxu0 0.0
    %1421 = vmatpush1.msra.mxu0 %v1199
    %1422 = vmatprep.subr.mxu0 0.0
    %1423 = vmatpush1.msra.mxu0 %v1200
    %1424 = vmatprep.subr.mxu0 0.0
    %1425 = vmatpush1.msra.mxu0 %v1201
    %1426 = vmatprep.subr.mxu0 0.0
    %1427 = vmatpush1.msra.mxu0 %v1202
    %1428 = vmatprep.subr.mxu0 0.0
    %1429 = vmatpush1.msra.mxu0 %v1203
    %1430 = vmatprep.subr.mxu0 0.0
    %1431 = vmatpush1.msra.mxu0 %v1204
    %1432 = vmatprep.subr.mxu0 0.0
    %1433 = vmatpush1.msra.mxu0 %v1205
    %1434 = vmatprep.subr.mxu0 0.0
    %1435 = vmatpush1.msra.mxu0 %v1206
    %1436 = vmatprep.subr.mxu0 0.0
    %1437 = vmatpush1.msra.mxu0 %v1207
    %1438 = vmatprep.subr.mxu0 0.0
    %1439 = vmatpush1.msra.mxu0 %v1208
    %1440 = vmatprep.subr.mxu0 0.0
    %1441 = vmatpush1.msra.mxu0 %v1209
    %1442 = vmatprep.subr.mxu0 0.0
    %1443 = vmatpush1.msra.mxu0 %v1210
    %1444 = vmatprep.subr.mxu0 0.0
    %1445 = vmatpush1.msra.mxu0 %v1211
    %1446 = vmatprep.subr.mxu0 0.0
    %1447 = vmatpush1.msra.mxu0 %v1212
    %1448 = vmatprep.subr.mxu0 0.0
    %1449 = vmatpush1.msra.mxu0 %v1213
    %1450 = vmatprep.mubr.f32.mxu0 %v1073
    %1451 = vmatmul.mubr.f32.gmra.mrb[0].mxu0 %v1072
    %v1452 = vpop.f32.mrb[0].mxu0
    %v1453 = vadd.f32 %v1288, %v1452
    %v1454 = vpop.f32.mrb[0].mxu0
    %1455 = vmatprep.mubr.f32.mxu0 %v1077
    %1456 = vmatmul.mubr.f32.gmra.mrb[0].mxu0 %v1076
    %v1457 = vpop.f32.mrb[0].mxu0
    %v1458 = vadd.f32 %v1293, %v1457
    %v1459 = vpop.f32.mrb[0].mxu0
    %1460 = vmatprep.mubr.f32.mxu0 %v1081
    %1461 = vmatmul.mubr.f32.gmra.mrb[0].mxu0 %v1080
    %v1462 = vpop.f32.mrb[0].mxu0
    %v1463 = vadd.f32 %v1298, %v1462
    %v1464 = vpop.f32.mrb[0].mxu0
    %1465 = vmatprep.mubr.f32.mxu0 %v1085
    %1466 = vmatmul.mubr.f32.gmra.mrb[0].mxu0 %v1084
    %v1467 = vpop.f32.mrb[0].mxu0
    %v1468 = vadd.f32 %v1303, %v1467
    %v1469 = vpop.f32.mrb[0].mxu0
    %1470 = vmatprep.mubr.f32.mxu0 %v1089
    %1471 = vmatmul.mubr.f32.gmra.mrb[0].mxu0 %v1088
    %v1472 = vpop.f32.mrb[0].mxu0
    %v1473 = vadd.f32 %v1308, %v1472
    %v1474 = vpop.f32.mrb[0].mxu0
    %1475 = vmatprep.mubr.f32.mxu0 %v1093
    %1476 = vmatmul.mubr.f32.gmra.mrb[0].mxu0 %v1092
    %v1477 = vpop.f32.mrb[0].mxu0
    %v1478 = vadd.f32 %v1313, %v1477
    %v1479 = vpop.f32.mrb[0].mxu0
    %1480 = vmatprep.mubr.f32.mxu0 %v1097
    %1481 = vmatmul.mubr.f32.gmra.mrb[0].mxu0 %v1096
    %v1482 = vpop.f32.mrb[0].mxu0
    %v1483 = vadd.f32 %v1318, %v1482
    %v1484 = vpop.f32.mrb[0].mxu0
    %1485 = vmatprep.mubr.f32.mxu0 %v1101
    %1486 = vmatmul.mubr.f32.gmra.mrb[0].mxu0 %v1100
    %v1487 = vpop.f32.mrb[0].mxu0
    %v1488 = vadd.f32 %v1323, %v1487
    %v1489 = vpop.f32.mrb[0].mxu0
    %1490 = vmatprep.mubr.f32.mxu0 %v1105
    %1491 = vmatmul.mubr.f32.gmra.mrb[0].mxu0 %v1104
    %v1492 = vpop.f32.mrb[0].mxu0
    %v1493 = vadd.f32 %v1328, %v1492
    %v1494 = vpop.f32.mrb[0].mxu0
    %1495 = vmatprep.mubr.f32.mxu0 %v1109
    %1496 = vmatmul.mubr.f32.gmra.mrb[0].mxu0 %v1108
    %v1497 = vpop.f32.mrb[0].mxu0
    %v1498 = vadd.f32 %v1333, %v1497
    %v1499 = vpop.f32.mrb[0].mxu0
    %1500 = vmatprep.mubr.f32.mxu0 %v1113
    %1501 = vmatmul.mubr.f32.gmra.mrb[0].mxu0 %v1112
    %v1502 = vpop.f32.mrb[0].mxu0
    %v1503 = vadd.f32 %v1338, %v1502
    %v1504 = vpop.f32.mrb[0].mxu0
    %1505 = vmatprep.mubr.f32.mxu0 %v1117
    %1506 = vmatmul.mubr.f32.gmra.mrb[0].mxu0 %v1116
    %v1507 = vpop.f32.mrb[0].mxu0
    %v1508 = vadd.f32 %v1343, %v1507
    %v1509 = vpop.f32.mrb[0].mxu0
    %1510 = vmatprep.mubr.f32.mxu0 %v1121
    %1511 = vmatmul.mubr.f32.gmra.mrb[0].mxu0 %v1120
    %v1512 = vpop.f32.mrb[0].mxu0
    %v1513 = vadd.f32 %v1348, %v1512
    %v1514 = vpop.f32.mrb[0].mxu0
    %1515 = vmatprep.mubr.f32.mxu0 %v1125
    %1516 = vmatmul.mubr.f32.gmra.mrb[0].mxu0 %v1124
    %v1517 = vpop.f32.mrb[0].mxu0
    %v1518 = vadd.f32 %v1353, %v1517
    %v1519 = vpop.f32.mrb[0].mxu0
    %1520 = vmatprep.mubr.f32.mxu0 %v1129
    %1521 = vmatmul.mubr.f32.gmra.mrb[0].mxu0 %v1128
    %v1522 = vpop.f32.mrb[0].mxu0
    %v1523 = vadd.f32 %v1358, %v1522
    %v1524 = vpop.f32.mrb[0].mxu0
    %1525 = vmatprep.mubr.f32.mxu0 %v1133
    %1526 = vmatmul.mubr.f32.gmra.mrb[0].mxu0 %v1132
    %v1527 = vpop.f32.mrb[0].mxu0
    %v1528 = vadd.f32 %v1363, %v1527
    %v1529 = vpop.f32.mrb[0].mxu0
    %1530 = vmatprep.mubr.f32.mxu0 %v1137
    %1531 = vmatmul.mubr.f32.gmra.mrb[0].mxu0 %v1136
    %v1532 = vpop.f32.mrb[0].mxu0
    %v1533 = vadd.f32 %v1368, %v1532
    %v1534 = vpop.f32.mrb[0].mxu0
    %1535 = vmatprep.mubr.f32.mxu0 %v1141
    %1536 = vmatmul.mubr.f32.gmra.mrb[0].mxu0 %v1140
    %v1537 = vpop.f32.mrb[0].mxu0
    %v1538 = vadd.f32 %v1373, %v1537
    %v1539 = vpop.f32.mrb[0].mxu0
    %1540 = vmatprep.mubr.f32.mxu0 %v1145
    %1541 = vmatmul.mubr.f32.gmra.mrb[0].mxu0 %v1144
    %v1542 = vpop.f32.mrb[0].mxu0
    %v1543 = vadd.f32 %v1378, %v1542
    %v1544 = vpop.f32.mrb[0].mxu0
    %1545 = vmatprep.mubr.f32.mxu0 %v1149
    %1546 = vmatmul.mubr.f32.gmra.mrb[0].mxu0 %v1148
    %v1547 = vpop.f32.mrb[0].mxu0
    %v1548 = vadd.f32 %v1383, %v1547
    %v1549 = vpop.f32.mrb[0].mxu0
    %1550 = vdwg.mxu0
    %1551 = vst [vmem:[%s5] sm:$0xff] %v1453
    %1552 = vst [vmem:[%s5 + $0x8] sm:$0xff] %v1458
    %1553 = vst [vmem:[%s5 + $0x10] sm:$0xff] %v1463
    %1554 = vst [vmem:[%s5 + $0x18] sm:$0xff] %v1468
    %1555 = vst [vmem:[%s5 + $0x20] sm:$0xff] %v1473
    %1556 = vst [vmem:[%s5 + $0x28] sm:$0xff] %v1478
    %1557 = vst [vmem:[%s5 + $0x30] sm:$0xff] %v1483
    %1558 = vst [vmem:[%s5 + $0x38] sm:$0xff] %v1488
    %1559 = vst [vmem:[%s5 + $0x40] sm:$0xff] %v1493
    %1560 = vst [vmem:[%s5 + $0x48] sm:$0xff] %v1498
    %1561 = vst [vmem:[%s5 + $0x50] sm:$0xff] %v1503
    %1562 = vst [vmem:[%s5 + $0x58] sm:$0xff] %v1508
    %1563 = vst [vmem:[%s5 + $0x60] sm:$0xff] %v1513
    %1564 = vst [vmem:[%s5 + $0x68] sm:$0xff] %v1518
    %1565 = vst [vmem:[%s5 + $0x70] sm:$0xff] %v1523
    %1566 = vst [vmem:[%s5 + $0x78] sm:$0xff] %v1528
    %1567 = vst [vmem:[%s5 + $0x80] sm:$0xff] %v1533
    %1568 = vst [vmem:[%s5 + $0x88] sm:$0xff] %v1538
    %1569 = vst [vmem:[%s5 + $0x90] sm:$0xff] %v1543
    %1570 = vst [vmem:[%s5 + $0x98] sm:$0xff] %v1548
    // Predicated region
    $region26: #{clip_mlp.1} parent=1 // pred_check
      _
    $region27: #{clip_mlp.1} parent=1 // pred_check_branch
      %1572 = sbr.rel (0) target = $region29
    $region28: #{clip_mlp.1} parent=1 // pred_region
      _
    $region29: #{clip_mlp.1} parent=1 // pred_fallthru
      _
    // Predicated region
    $region30: #{clip_mlp.1} parent=1 // pred_check
      _
    $region31: #{clip_mlp.1} parent=1 // pred_check_branch
      %1574 = sbr.rel (0) target = $region33
    $region32: #{clip_mlp.1} parent=1 // pred_region
      _
    $region33: #{clip_mlp.1} parent=1 // pred_fallthru
      _
    %1575 = vsyncpa [#allocation3], 1

</llo_original>
